<compile_context>
chip_gen: v6e
topology: v6e:2x2x1
jax: 0.10.0
libtpu: 0.0.40
codegen_flags: <defaults>
</compile_context>

<pallas_src>
import functools

import jax
import jax.numpy as jnp
from jax.experimental import pallas as pl
from jax.experimental.pallas import tpu as pltpu

# Small analogue of arch = [2000, 1500, 1000, 500, 1]
ARCH = [32, 24, 16, 8, 1]
NUM_EMBEDDINGS = 16
EMBEDDING_DIM = 2 * ARCH[-1]          # = 2
COMMITMENT_COST = 0.01
IN_CHANNELS = 20                      # one-hot amino-acid channels
LATENT_CHANNELS = 2                   # encoder conv output channels

_VMEM = pl.BlockSpec(memory_space=pltpu.MemorySpace.VMEM)


# ----------------------------------------------------------------------------
# Fused Pallas kernel
# ----------------------------------------------------------------------------
def _affine(h, w, b):
    """h @ w + b with a VPU fast path for the degenerate K == 1 layers."""
    if w.shape[0] == 1:
        return h * w + b              # (M,1)*(1,N) broadcast outer product, no MXU
    return jnp.dot(h, w, preferred_element_type=jnp.float32) + b


def _fused_forward_kernel(n_enc, n_dec, *refs):
    it = iter(refs)
    x_ref = next(it)
    enc_wb = [(next(it), next(it)) for _ in range(n_enc)]
    gt_ref, wct_ref, convb_ref = next(it), next(it), next(it)
    cb_ref, cbt_ref, cbsq_ref = next(it), next(it), next(it)
    g_ref, dwt_ref, dbt_ref = next(it), next(it), next(it)
    dec_wb = [(next(it), next(it)) for _ in range(n_dec)]
    recon_ref, enc_out_ref, q_out_ref, idx_ref, stats_ref = (
        next(it), next(it), next(it), next(it), next(it))

    # ---------------- encoder Linear chain (matmuls over the last dim) ----------------
    h = x_ref[...]                                            # (B*C, ARCH[0])
    for w_ref, b_ref in enc_wb:
        h = _affine(h, w_ref[...], b_ref[...])                # ... -> (B*C, 1)

    # ---- Conv1d(C -> D, k=1): (B*C, 1) -> (B, D) without an in-kernel reshape ----
    # encoded[b, j] = sum_c h[b*C+c] * conv_w[c, j] + conv_b[j]
    #              = (Gt @ (h * Wc_tiled))[b, j] + conv_b[j]
    encoded = (jnp.dot(gt_ref[...], h * wct_ref[...],
                       preferred_element_type=jnp.float32)
               + convb_ref[...])                              # (B, D)

    # ---------------- vector quantizer (eval path, no EMA update) ----------------
    cb = cb_ref[...]                                          # (Ne, D)
    x_sq = jnp.sum(encoded * encoded, axis=1, keepdims=True)  # (B, 1)
    dists = (x_sq + cbsq_ref[...]                             # precomputed |e|^2 row (1, Ne)
             - 2.0 * jnp.dot(encoded, cbt_ref[...],           # codebook pre-transposed (D, Ne)
                             preferred_element_type=jnp.float32))     # (B, Ne)

    b_sz, n_emb = dists.shape
    dmin = jnp.min(dists, axis=1, keepdims=True)
    col = jax.lax.broadcasted_iota(jnp.int32, (b_sz, n_emb), 1)
    idx = jnp.min(jnp.where(dists <= dmin, col, jnp.int32(n_emb)),
                  axis=1, keepdims=True)                      # (B, 1) first-hit argmin
    onehot = (col == idx).astype(jnp.float32)                 # (B, Ne)
    quantized = jnp.dot(onehot, cb, preferred_element_type=jnp.float32)   # (B, D)

    # eval-mode losses: q_latent + commitment * e_latent (same forward value)
    mse = jnp.mean((quantized - encoded) ** 2)
    loss = mse + COMMITMENT_COST * mse
    # straight-through estimator (forward value == quantized up to fp)
    q_st = encoded + (quantized - encoded)

    avg_probs = jnp.mean(onehot, axis=0, keepdims=True)                   # (1, Ne)
    ppl = jnp.exp(-jnp.sum(avg_probs * jnp.log(avg_probs + 1e-10)))

    # ---- ConvTranspose1d(D -> C, k=1): (B, D) -> (B*C, 1), again reshape-free ----
    # h0[b*C+c] = sum_j q_st[b, j] * dw[j, c] + db[c]
    dq = jnp.dot(g_ref[...], q_st, preferred_element_type=jnp.float32)    # (B*C, D)
    h = jnp.sum(dq * dwt_ref[...], axis=1, keepdims=True) + dbt_ref[...]  # (B*C, 1)

    # ---------------- decoder Linear chain ----------------
    for w_ref, b_ref in dec_wb:
        h = _affine(h, w_ref[...], b_ref[...])                # -> (B*C, ARCH[0])

    recon_ref[...] = h
    enc_out_ref[...] = encoded
    q_out_ref[...] = q_st
    idx_ref[...] = idx
    lane = jax.lax.broadcasted_iota(jnp.int32, (1, 2), 1)
    stats_ref[...] = jnp.where(lane == 0, loss, ppl)          # [loss, perplexity]


def fused_forward(x_flat, ops):
    """Single pallas_call for the whole VQ-VAE forward. x_flat: (B*C, ARCH[0])."""
    n_enc = len(ops["enc_blocks"])
    n_dec = len(ops["dec_blocks"])
    M, L0 = x_flat.shape
    B = ops["gt"].shape[0]
    D = ops["codebook"].shape[1]

    inputs = [x_flat]
    for w, b in ops["enc_blocks"]:
        inputs += [w, b]
    inputs += [ops["gt"], ops["wc_tiled"], ops["conv_b"],
               ops["codebook"], ops["codebook_t"], ops["codebook_sq"],
               ops["g"], ops["dwT_tiled"], ops["db_tiled"]]
    for w, b in ops["dec_blocks"]:
        inputs += [w, b]

    out_shapes = (
        jax.ShapeDtypeStruct((M, L0), jnp.float32),   # x_recon (flat)
        jax.ShapeDtypeStruct((B, D), jnp.float32),    # encoded
        jax.ShapeDtypeStruct((B, D), jnp.float32),    # quantized (straight-through)
        jax.ShapeDtypeStruct((B, 1), jnp.int32),      # encoding indices
        jax.ShapeDtypeStruct((1, 2), jnp.float32),    # [loss, perplexity]
    )
    return pl.pallas_call(
        functools.partial(_fused_forward_kernel, n_enc, n_dec),
        out_shape=out_shapes,
        in_specs=[_VMEM] * len(inputs),
        out_specs=(_VMEM,) * len(out_shapes),
    )(*inputs)


# ----------------------------------------------------------------------------
# Parameter construction (deterministic, PyTorch-default-style init)
# ----------------------------------------------------------------------------
def _linear_params(key, fan_in, fan_out):
    kw, kb = jax.random.split(key)
    bound = 1.0 / jnp.sqrt(jnp.float32(fan_in))
    w = jax.random.uniform(kw, (fan_in, fan_out), jnp.float32, -bound, bound)
    b = jax.random.uniform(kb, (1, fan_out), jnp.float32, -bound, bound)
    return w, b


def init_params(key):
    keys = jax.random.split(key, 16)
    params = {}

    # encoder: Linear(arch[i] -> arch[i+1]) chain, then Conv1d(20 -> 2, k=1)
    params["enc_blocks"] = [
        _linear_params(keys[i], ARCH[i], ARCH[i + 1]) for i in range(len(ARCH) - 1)
    ]
    params["enc_conv"] = _linear_params(keys[5], IN_CHANNELS, LATENT_CHANNELS)

    # vector quantizer codebook (Embedding.weight.data.normal_())
    params["codebook"] = jax.random.normal(
        keys[6], (NUM_EMBEDDINGS, EMBEDDING_DIM), jnp.float32
    )

    # decoder: ConvTranspose1d(2 -> 20, k=1), then Linear chain on reversed arch
    rev = ARCH[::-1]
    params["dec_deconv"] = _linear_params(keys[7], LATENT_CHANNELS, IN_CHANNELS)
    params["dec_blocks"] = [
        _linear_params(keys[8 + i], rev[i], rev[i + 1]) for i in range(len(rev) - 1)
    ]
    return params


def prepare(params, batch):
    """One-time host-side prep: transposed/tiled weight variants + segment matrices,
    so the fused kernel needs no relayout / transpose / reshape and no per-call glue."""
    B, C = batch, IN_CHANNELS
    wc, bc = params["enc_conv"]            # (C, D), (1, D)
    wd, bd = params["dec_deconv"]          # (D, C), (1, C)
    cb = params["codebook"]                # (Ne, D)

    m = jnp.arange(B * C)
    gt = (m[None, :] // C == jnp.arange(B)[:, None]).astype(jnp.float32)   # (B, B*C)

    return dict(
        enc_blocks=params["enc_blocks"],
        dec_blocks=params["dec_blocks"],
        gt=gt,                                                    # (B, B*C) segment sum
        g=jnp.transpose(gt),                                      # (B*C, B) segment expand
        wc_tiled=jnp.tile(wc, (B, 1)),                            # (B*C, D)
        conv_b=bc,                                                # (1, D)
        codebook=cb,                                              # (Ne, D)
        codebook_t=jnp.transpose(cb),                             # (D, Ne) pre-transposed
        codebook_sq=jnp.transpose(jnp.sum(cb * cb, axis=1, keepdims=True)),  # (1, Ne)
        dwT_tiled=jnp.tile(jnp.transpose(wd), (B, 1)),            # (B*C, D)
        db_tiled=jnp.tile(jnp.transpose(bd), (B, 1)),             # (B*C, 1)
    )


# ----------------------------------------------------------------------------
# Model forward (thin JAX wrapper around ONE fused Pallas kernel)
# ----------------------------------------------------------------------------
def forward(prepared, x):
    """x: (B, 20, ARCH[0]) float32, NCL layout like the PyTorch module."""
    B, C, L0 = x.shape
    x_flat = x.reshape(B * C, L0)

    recon_flat, encoded_2d, q_2d, enc_idx, stats = fused_forward(x_flat, prepared)

    x_recon = recon_flat.reshape(B, C, L0)                        # (B, 20, ARCH[0])
    encoded = encoded_2d.reshape(B, LATENT_CHANNELS, 1)           # (B, 2, 1)
    quantized = q_2d.reshape(B, LATENT_CHANNELS, 1)               # (B, 2, 1)
    loss = stats[0, 0]
    perplexity = stats[0, 1]

    # mirror the PyTorch return:
    # (loss, x_recon, perplexity, quantized, encoded, embeddings, encodings)
    # where `embeddings` = encoding indices, `encodings` = codebook weights
    # TODO(synk): training-mode EMA codebook update is not implemented (eval forward only).
    return (loss, x_recon, perplexity, quantized, encoded, enc_idx,
            prepared["codebook"])


if __name__ == "__main__":
    key = jax.random.PRNGKey(0)
    k_params, k_x = jax.random.split(key)

    B = 2
    params = init_params(k_params)
    prepared = prepare(params, B)
    x = jax.random.normal(k_x, (B, IN_CHANNELS, ARCH[0]), jnp.float32)  # (2, 20, 32)

    fwd = jax.jit(functools.partial(forward, prepared))
    outs = jax.block_until_ready(fwd(x))

    loss, x_recon, perplexity, quantized, encoded, embeddings, encodings = outs
    assert x_recon.shape == (B, IN_CHANNELS, ARCH[0])
    assert quantized.shape == (B, LATENT_CHANNELS, 1)
    assert encoded.shape == (B, LATENT_CHANNELS, 1)
    assert embeddings.shape == (B, 1)
    assert encodings.shape == (NUM_EMBEDDINGS, EMBEDDING_DIM)
    assert loss.shape == () and perplexity.shape == ()
    assert bool(jnp.isfinite(loss)) and bool(jnp.isfinite(perplexity))
    assert bool(jnp.all(jnp.isfinite(x_recon)))

    print("KERNEL_OK")
</pallas_src>

<mosaic_0001>
module attributes {stable_mosaic.version = 11 : i64} {
  func.func @_fused_forward_kernel(%arg0: memref<40x32xf32, #tpu.memory_space<vmem>>, %arg1: memref<32x24xf32, #tpu.memory_space<vmem>>, %arg2: memref<1x24xf32, #tpu.memory_space<vmem>>, %arg3: memref<24x16xf32, #tpu.memory_space<vmem>>, %arg4: memref<1x16xf32, #tpu.memory_space<vmem>>, %arg5: memref<16x8xf32, #tpu.memory_space<vmem>>, %arg6: memref<1x8xf32, #tpu.memory_space<vmem>>, %arg7: memref<8x1xf32, #tpu.memory_space<vmem>>, %arg8: memref<1x1xf32, #tpu.memory_space<vmem>>, %arg9: memref<2x40xf32, #tpu.memory_space<vmem>>, %arg10: memref<40x2xf32, #tpu.memory_space<vmem>>, %arg11: memref<1x2xf32, #tpu.memory_space<vmem>>, %arg12: memref<16x2xf32, #tpu.memory_space<vmem>>, %arg13: memref<2x16xf32, #tpu.memory_space<vmem>>, %arg14: memref<1x16xf32, #tpu.memory_space<vmem>>, %arg15: memref<40x2xf32, #tpu.memory_space<vmem>>, %arg16: memref<40x2xf32, #tpu.memory_space<vmem>>, %arg17: memref<40x1xf32, #tpu.memory_space<vmem>>, %arg18: memref<1x8xf32, #tpu.memory_space<vmem>>, %arg19: memref<1x8xf32, #tpu.memory_space<vmem>>, %arg20: memref<8x16xf32, #tpu.memory_space<vmem>>, %arg21: memref<1x16xf32, #tpu.memory_space<vmem>>, %arg22: memref<16x24xf32, #tpu.memory_space<vmem>>, %arg23: memref<1x24xf32, #tpu.memory_space<vmem>>, %arg24: memref<24x32xf32, #tpu.memory_space<vmem>>, %arg25: memref<1x32xf32, #tpu.memory_space<vmem>>, %arg26: memref<40x32xf32, #tpu.memory_space<vmem>>, %arg27: memref<2x2xf32, #tpu.memory_space<vmem>>, %arg28: memref<2x2xf32, #tpu.memory_space<vmem>>, %arg29: memref<2x1xi32, #tpu.memory_space<vmem>>, %arg30: memref<1x2xf32, #tpu.memory_space<vmem>>) attributes {dimension_semantics = [], scalar_prefetch = 0 : i64, scratch_operands = 0 : i64, tpu.core_type = #tpu.core_type<tc>} {
    %c0 = arith.constant 0 : index
    %c0_0 = arith.constant 0 : index
    %0 = vector.load %arg0[%c0, %c0_0] : memref<40x32xf32, #tpu.memory_space<vmem>>, vector<40x32xf32>
    %c0_1 = arith.constant 0 : index
    %c0_2 = arith.constant 0 : index
    %1 = vector.load %arg1[%c0_1, %c0_2] : memref<32x24xf32, #tpu.memory_space<vmem>>, vector<32x24xf32>
    %c0_3 = arith.constant 0 : index
    %c0_4 = arith.constant 0 : index
    %2 = vector.load %arg2[%c0_3, %c0_4] : memref<1x24xf32, #tpu.memory_space<vmem>>, vector<1x24xf32>
    %cst = arith.constant dense<0.000000e+00> : vector<40x24xf32>
    %3 = tpu.matmul %0, %1, %cst {dimension_numbers = #tpu.dot_dimension_numbers<[1], [0], [0], [1], [0, 0, 1, 1], [], []>} : vector<40x32xf32>, vector<32x24xf32>, vector<40x24xf32> -> vector<40x24xf32>
    %4 = vector.broadcast %2 : vector<1x24xf32> to vector<40x24xf32>
    %5 = arith.addf %3, %4 : vector<40x24xf32>
    %c0_5 = arith.constant 0 : index
    %c0_6 = arith.constant 0 : index
    %6 = vector.load %arg3[%c0_5, %c0_6] : memref<24x16xf32, #tpu.memory_space<vmem>>, vector<24x16xf32>
    %c0_7 = arith.constant 0 : index
    %c0_8 = arith.constant 0 : index
    %7 = vector.load %arg4[%c0_7, %c0_8] : memref<1x16xf32, #tpu.memory_space<vmem>>, vector<1x16xf32>
    %cst_9 = arith.constant dense<0.000000e+00> : vector<40x16xf32>
    %8 = tpu.matmul %5, %6, %cst_9 {dimension_numbers = #tpu.dot_dimension_numbers<[1], [0], [0], [1], [0, 0, 1, 1], [], []>} : vector<40x24xf32>, vector<24x16xf32>, vector<40x16xf32> -> vector<40x16xf32>
    %9 = vector.broadcast %7 : vector<1x16xf32> to vector<40x16xf32>
    %10 = arith.addf %8, %9 : vector<40x16xf32>
    %c0_10 = arith.constant 0 : index
    %c0_11 = arith.constant 0 : index
    %11 = vector.load %arg5[%c0_10, %c0_11] : memref<16x8xf32, #tpu.memory_space<vmem>>, vector<16x8xf32>
    %c0_12 = arith.constant 0 : index
    %c0_13 = arith.constant 0 : index
    %12 = vector.load %arg6[%c0_12, %c0_13] : memref<1x8xf32, #tpu.memory_space<vmem>>, vector<1x8xf32>
    %cst_14 = arith.constant dense<0.000000e+00> : vector<40x8xf32>
    %13 = tpu.matmul %10, %11, %cst_14 {dimension_numbers = #tpu.dot_dimension_numbers<[1], [0], [0], [1], [0, 0, 1, 1], [], []>} : vector<40x16xf32>, vector<16x8xf32>, vector<40x8xf32> -> vector<40x8xf32>
    %14 = vector.broadcast %12 : vector<1x8xf32> to vector<40x8xf32>
    %15 = arith.addf %13, %14 : vector<40x8xf32>
    %c0_15 = arith.constant 0 : index
    %c0_16 = arith.constant 0 : index
    %16 = vector.load %arg7[%c0_15, %c0_16] : memref<8x1xf32, #tpu.memory_space<vmem>>, vector<8x1xf32>
    %c0_17 = arith.constant 0 : index
    %c0_18 = arith.constant 0 : index
    %17 = vector.load %arg8[%c0_17, %c0_18] : memref<1x1xf32, #tpu.memory_space<vmem>>, vector<1x1xf32>
    %cst_19 = arith.constant dense<0.000000e+00> : vector<40x1xf32>
    %18 = tpu.matmul %15, %16, %cst_19 {dimension_numbers = #tpu.dot_dimension_numbers<[1], [0], [0], [1], [0, 0, 1, 1], [], []>} : vector<40x8xf32>, vector<8x1xf32>, vector<40x1xf32> -> vector<40x1xf32>
    %19 = vector.broadcast %17 : vector<1x1xf32> to vector<40x1xf32>
    %20 = arith.addf %18, %19 : vector<40x1xf32>
    %c0_20 = arith.constant 0 : index
    %c0_21 = arith.constant 0 : index
    %21 = vector.load %arg9[%c0_20, %c0_21] : memref<2x40xf32, #tpu.memory_space<vmem>>, vector<2x40xf32>
    %c0_22 = arith.constant 0 : index
    %c0_23 = arith.constant 0 : index
    %22 = vector.load %arg10[%c0_22, %c0_23] : memref<40x2xf32, #tpu.memory_space<vmem>>, vector<40x2xf32>
    %23 = vector.broadcast %20 : vector<40x1xf32> to vector<40x2xf32>
    %24 = arith.mulf %23, %22 : vector<40x2xf32>
    %cst_24 = arith.constant dense<0.000000e+00> : vector<2x2xf32>
    %25 = tpu.matmul %21, %24, %cst_24 {dimension_numbers = #tpu.dot_dimension_numbers<[1], [0], [0], [1], [0, 0, 1, 1], [], []>} : vector<2x40xf32>, vector<40x2xf32>, vector<2x2xf32> -> vector<2x2xf32>
    %c0_25 = arith.constant 0 : index
    %c0_26 = arith.constant 0 : index
    %26 = vector.load %arg11[%c0_25, %c0_26] : memref<1x2xf32, #tpu.memory_space<vmem>>, vector<1x2xf32>
    %27 = vector.broadcast %26 : vector<1x2xf32> to vector<2x2xf32>
    %28 = arith.addf %25, %27 : vector<2x2xf32>
    %c0_27 = arith.constant 0 : index
    %c0_28 = arith.constant 0 : index
    %29 = vector.load %arg12[%c0_27, %c0_28] : memref<16x2xf32, #tpu.memory_space<vmem>>, vector<16x2xf32>
    %30 = arith.mulf %28, %28 : vector<2x2xf32>
    %cst_29 = arith.constant dense<0.000000e+00> : vector<2xf32>
    %31 = vector.multi_reduction <add>, %30, %cst_29 [1] : vector<2x2xf32> to vector<2xf32>
    %32 = vector.shape_cast %31 : vector<2xf32> to vector<2x1xf32>
    %c0_30 = arith.constant 0 : index
    %c0_31 = arith.constant 0 : index
    %33 = vector.load %arg14[%c0_30, %c0_31] : memref<1x16xf32, #tpu.memory_space<vmem>>, vector<1x16xf32>
    %34 = vector.broadcast %32 : vector<2x1xf32> to vector<2x16xf32>
    %35 = vector.broadcast %33 : vector<1x16xf32> to vector<2x16xf32>
    %36 = arith.addf %34, %35 : vector<2x16xf32>
    %c0_32 = arith.constant 0 : index
    %c0_33 = arith.constant 0 : index
    %37 = vector.load %arg13[%c0_32, %c0_33] : memref<2x16xf32, #tpu.memory_space<vmem>>, vector<2x16xf32>
    %cst_34 = arith.constant dense<0.000000e+00> : vector<2x16xf32>
    %38 = tpu.matmul %28, %37, %cst_34 {dimension_numbers = #tpu.dot_dimension_numbers<[1], [0], [0], [1], [0, 0, 1, 1], [], []>} : vector<2x2xf32>, vector<2x16xf32>, vector<2x16xf32> -> vector<2x16xf32>
    %cst_35 = arith.constant 2.000000e+00 : f32
    %39 = vector.broadcast %cst_35 : f32 to vector<2x16xf32>
    %40 = arith.mulf %39, %38 : vector<2x16xf32>
    %41 = arith.subf %36, %40 : vector<2x16xf32>
    %cst_36 = arith.constant dense<0x7F800000> : vector<2xf32>
    %42 = vector.multi_reduction <minimumf>, %41, %cst_36 [1] : vector<2x16xf32> to vector<2xf32>
    %43 = vector.shape_cast %42 : vector<2xf32> to vector<2x1xf32>
    %44 = tpu.iota {dimensions = array<i32: 1>} : vector<2x16xi32>
    %45 = vector.broadcast %43 : vector<2x1xf32> to vector<2x16xf32>
    %46 = arith.cmpf ole, %41, %45 : vector<2x16xf32>
    %c16_i32 = arith.constant 16 : i32
    %47 = vector.broadcast %c16_i32 : i32 to vector<2x16xi32>
    %48 = arith.select %46, %44, %47 : vector<2x16xi1>, vector<2x16xi32>
    %cst_37 = arith.constant dense<2147483647> : vector<2xi32>
    %49 = vector.multi_reduction <minsi>, %48, %cst_37 [1] : vector<2x16xi32> to vector<2xi32>
    %50 = vector.shape_cast %49 : vector<2xi32> to vector<2x1xi32>
    %51 = vector.broadcast %50 : vector<2x1xi32> to vector<2x16xi32>
    %52 = arith.cmpi eq, %44, %51 : vector<2x16xi32>
    %53 = arith.extui %52 : vector<2x16xi1> to vector<2x16xi32>
    %54 = arith.sitofp %53 : vector<2x16xi32> to vector<2x16xf32>
    %cst_38 = arith.constant dense<0.000000e+00> : vector<2x2xf32>
    %55 = tpu.matmul %54, %29, %cst_38 {dimension_numbers = #tpu.dot_dimension_numbers<[1], [0], [0], [1], [0, 0, 1, 1], [], []>} : vector<2x16xf32>, vector<16x2xf32>, vector<2x2xf32> -> vector<2x2xf32>
    %56 = arith.subf %55, %28 : vector<2x2xf32>
    %57 = arith.mulf %56, %56 : vector<2x2xf32>
    %58 = vector.shape_cast %57 : vector<2x2xf32> to vector<1x2x2xf32>
    %cst_39 = arith.constant dense<0.000000e+00> : vector<1xf32>
    %59 = vector.multi_reduction <add>, %58, %cst_39 [1, 2] : vector<1x2x2xf32> to vector<1xf32>
    %60 = vector.shape_cast %59 : vector<1xf32> to vector<1x1x1xf32>
    %61 = vector.extract %60[0, 0, 0] : f32 from vector<1x1x1xf32>
    %cst_40 = arith.constant 4.000000e+00 : f32
    %62 = arith.divf %61, %cst_40 : f32
    %cst_41 = arith.constant 0.00999999977 : f32
    %63 = arith.mulf %cst_41, %62 : f32
    %64 = arith.addf %62, %63 : f32
    %65 = arith.subf %55, %28 : vector<2x2xf32>
    %66 = arith.addf %28, %65 : vector<2x2xf32>
    %cst_42 = arith.constant dense<0.000000e+00> : vector<16xf32>
    %67 = vector.multi_reduction <add>, %54, %cst_42 [0] : vector<2x16xf32> to vector<16xf32>
    %68 = vector.shape_cast %67 : vector<16xf32> to vector<1x16xf32>
    %cst_43 = arith.constant 2.000000e+00 : f32
    %69 = vector.broadcast %cst_43 : f32 to vector<1x16xf32>
    %70 = arith.divf %68, %69 : vector<1x16xf32>
    %cst_44 = arith.constant 1.000000e-10 : f32
    %71 = vector.broadcast %cst_44 : f32 to vector<1x16xf32>
    %72 = arith.addf %70, %71 : vector<1x16xf32>
    %73 = math.log %72 : vector<1x16xf32>
    %74 = arith.mulf %70, %73 : vector<1x16xf32>
    %75 = vector.shape_cast %74 : vector<1x16xf32> to vector<1x1x16xf32>
    %cst_45 = arith.constant dense<0.000000e+00> : vector<1xf32>
    %76 = vector.multi_reduction <add>, %75, %cst_45 [1, 2] : vector<1x1x16xf32> to vector<1xf32>
    %77 = vector.shape_cast %76 : vector<1xf32> to vector<1x1x1xf32>
    %78 = vector.extract %77[0, 0, 0] : f32 from vector<1x1x1xf32>
    %cst_46 = arith.constant 0.000000e+00 : f32
    %79 = arith.subf %cst_46, %78 : f32
    %80 = math.exp %79 : f32
    %c0_47 = arith.constant 0 : index
    %c0_48 = arith.constant 0 : index
    %81 = vector.load %arg15[%c0_47, %c0_48] : memref<40x2xf32, #tpu.memory_space<vmem>>, vector<40x2xf32>
    %cst_49 = arith.constant dense<0.000000e+00> : vector<40x2xf32>
    %82 = tpu.matmul %81, %66, %cst_49 {dimension_numbers = #tpu.dot_dimension_numbers<[1], [0], [0], [1], [0, 0, 1, 1], [], []>} : vector<40x2xf32>, vector<2x2xf32>, vector<40x2xf32> -> vector<40x2xf32>
    %c0_50 = arith.constant 0 : index
    %c0_51 = arith.constant 0 : index
    %83 = vector.load %arg16[%c0_50, %c0_51] : memref<40x2xf32, #tpu.memory_space<vmem>>, vector<40x2xf32>
    %84 = arith.mulf %82, %83 : vector<40x2xf32>
    %cst_52 = arith.constant dense<0.000000e+00> : vector<40xf32>
    %85 = vector.multi_reduction <add>, %84, %cst_52 [1] : vector<40x2xf32> to vector<40xf32>
    %86 = vector.shape_cast %85 : vector<40xf32> to vector<40x1xf32>
    %c0_53 = arith.constant 0 : index
    %c0_54 = arith.constant 0 : index
    %87 = vector.load %arg17[%c0_53, %c0_54] : memref<40x1xf32, #tpu.memory_space<vmem>>, vector<40x1xf32>
    %88 = arith.addf %86, %87 : vector<40x1xf32>
    %c0_55 = arith.constant 0 : index
    %c0_56 = arith.constant 0 : index
    %89 = vector.load %arg18[%c0_55, %c0_56] : memref<1x8xf32, #tpu.memory_space<vmem>>, vector<1x8xf32>
    %c0_57 = arith.constant 0 : index
    %c0_58 = arith.constant 0 : index
    %90 = vector.load %arg19[%c0_57, %c0_58] : memref<1x8xf32, #tpu.memory_space<vmem>>, vector<1x8xf32>
    %91 = vector.broadcast %88 : vector<40x1xf32> to vector<40x8xf32>
    %92 = vector.broadcast %89 : vector<1x8xf32> to vector<40x8xf32>
    %93 = arith.mulf %91, %92 : vector<40x8xf32>
    %94 = vector.broadcast %90 : vector<1x8xf32> to vector<40x8xf32>
    %95 = arith.addf %93, %94 : vector<40x8xf32>
    %c0_59 = arith.constant 0 : index
    %c0_60 = arith.constant 0 : index
    %96 = vector.load %arg20[%c0_59, %c0_60] : memref<8x16xf32, #tpu.memory_space<vmem>>, vector<8x16xf32>
    %c0_61 = arith.constant 0 : index
    %c0_62 = arith.constant 0 : index
    %97 = vector.load %arg21[%c0_61, %c0_62] : memref<1x16xf32, #tpu.memory_space<vmem>>, vector<1x16xf32>
    %cst_63 = arith.constant dense<0.000000e+00> : vector<40x16xf32>
    %98 = tpu.matmul %95, %96, %cst_63 {dimension_numbers = #tpu.dot_dimension_numbers<[1], [0], [0], [1], [0, 0, 1, 1], [], []>} : vector<40x8xf32>, vector<8x16xf32>, vector<40x16xf32> -> vector<40x16xf32>
    %99 = vector.broadcast %97 : vector<1x16xf32> to vector<40x16xf32>
    %100 = arith.addf %98, %99 : vector<40x16xf32>
    %c0_64 = arith.constant 0 : index
    %c0_65 = arith.constant 0 : index
    %101 = vector.load %arg22[%c0_64, %c0_65] : memref<16x24xf32, #tpu.memory_space<vmem>>, vector<16x24xf32>
    %c0_66 = arith.constant 0 : index
    %c0_67 = arith.constant 0 : index
    %102 = vector.load %arg23[%c0_66, %c0_67] : memref<1x24xf32, #tpu.memory_space<vmem>>, vector<1x24xf32>
    %cst_68 = arith.constant dense<0.000000e+00> : vector<40x24xf32>
    %103 = tpu.matmul %100, %101, %cst_68 {dimension_numbers = #tpu.dot_dimension_numbers<[1], [0], [0], [1], [0, 0, 1, 1], [], []>} : vector<40x16xf32>, vector<16x24xf32>, vector<40x24xf32> -> vector<40x24xf32>
    %104 = vector.broadcast %102 : vector<1x24xf32> to vector<40x24xf32>
    %105 = arith.addf %103, %104 : vector<40x24xf32>
    %c0_69 = arith.constant 0 : index
    %c0_70 = arith.constant 0 : index
    %106 = vector.load %arg24[%c0_69, %c0_70] : memref<24x32xf32, #tpu.memory_space<vmem>>, vector<24x32xf32>
    %c0_71 = arith.constant 0 : index
    %c0_72 = arith.constant 0 : index
    %107 = vector.load %arg25[%c0_71, %c0_72] : memref<1x32xf32, #tpu.memory_space<vmem>>, vector<1x32xf32>
    %cst_73 = arith.constant dense<0.000000e+00> : vector<40x32xf32>
    %108 = tpu.matmul %105, %106, %cst_73 {dimension_numbers = #tpu.dot_dimension_numbers<[1], [0], [0], [1], [0, 0, 1, 1], [], []>} : vector<40x24xf32>, vector<24x32xf32>, vector<40x32xf32> -> vector<40x32xf32>
    %109 = vector.broadcast %107 : vector<1x32xf32> to vector<40x32xf32>
    %110 = arith.addf %108, %109 : vector<40x32xf32>
    %c0_74 = arith.constant 0 : index
    %c0_75 = arith.constant 0 : index
    %111 = vector.load %arg26[%c0_74, %c0_75] : memref<40x32xf32, #tpu.memory_space<vmem>>, vector<40x32xf32>
    tpu.vector_store %arg26[%c0_74, %c0_75], %110 {strides = array<i32>} : memref<40x32xf32, #tpu.memory_space<vmem>>, vector<40x32xf32>,
    %c0_76 = arith.constant 0 : index
    %c0_77 = arith.constant 0 : index
    %112 = vector.load %arg27[%c0_76, %c0_77] : memref<2x2xf32, #tpu.memory_space<vmem>>, vector<2x2xf32>
    tpu.vector_store %arg27[%c0_76, %c0_77], %28 {strides = array<i32>} : memref<2x2xf32, #tpu.memory_space<vmem>>, vector<2x2xf32>,
    %c0_78 = arith.constant 0 : index
    %c0_79 = arith.constant 0 : index
    %113 = vector.load %arg28[%c0_78, %c0_79] : memref<2x2xf32, #tpu.memory_space<vmem>>, vector<2x2xf32>
    tpu.vector_store %arg28[%c0_78, %c0_79], %66 {strides = array<i32>} : memref<2x2xf32, #tpu.memory_space<vmem>>, vector<2x2xf32>,
    %c0_80 = arith.constant 0 : index
    %c0_81 = arith.constant 0 : index
    %114 = vector.load %arg29[%c0_80, %c0_81] : memref<2x1xi32, #tpu.memory_space<vmem>>, vector<2x1xi32>
    tpu.vector_store %arg29[%c0_80, %c0_81], %50 {strides = array<i32>} : memref<2x1xi32, #tpu.memory_space<vmem>>, vector<2x1xi32>,
    %115 = tpu.iota {dimensions = array<i32: 1>} : vector<1x2xi32>
    %c0_i32 = arith.constant 0 : i32
    %116 = vector.broadcast %c0_i32 : i32 to vector<1x2xi32>
    %117 = arith.cmpi eq, %115, %116 : vector<1x2xi32>
    %118 = vector.broadcast %64 : f32 to vector<1x2xf32>
    %119 = vector.broadcast %80 : f32 to vector<1x2xf32>
    %120 = arith.select %117, %118, %119 : vector<1x2xi1>, vector<1x2xf32>
    %c0_82 = arith.constant 0 : index
    %c0_83 = arith.constant 0 : index
    %121 = vector.load %arg30[%c0_82, %c0_83] : memref<1x2xf32, #tpu.memory_space<vmem>>, vector<1x2xf32>
    tpu.vector_store %arg30[%c0_82, %c0_83], %120 {strides = array<i32>} : memref<1x2xf32, #tpu.memory_space<vmem>>, vector<1x2xf32>,
    return
  }
}

</mosaic_0001>

<llo_original>
// kernel: forward.1
$region0: #{forward.1}
  #allocation0 [shape = 'u32[]', space=smem, size = 0x4, offset = 0x4, fixed_abs, tag = 'smem constant byte address 0x4 - core index']
  #allocation1 [shape = 'u32[144,128]{1,0:T(1,128)}', space=vmem, size = 0x12000, scoped, tag = 'internal scratch']
  #allocation2 [shape = 'f32[1,1]{1,0:T(1,128)S(1)}', space=vmem, size = 0x200, scoped, tag = 'scoped memory for forward.1']
  %s0 = inlined_call_operand.smem [shape: u32[31], index: -1, kind: input, shape index: {}]
  %s1 = sld [smem:[%s0]]
  %s2 = scalar_lea.smem %s0, 1
  %s3 = sld [smem:[%s2]]
  %s4 = scalar_lea.smem %s0, 2
  %s5 = sld [smem:[%s4]]
  %s6 = scalar_lea.smem %s0, 3
  %s7 = sld [smem:[%s6]]
  %s8 = scalar_lea.smem %s0, 4
  %s9 = sld [smem:[%s8]]
  %s10 = scalar_lea.smem %s0, 5
  %s11 = sld [smem:[%s10]]
  %s12 = scalar_lea.smem %s0, 6
  %s13 = sld [smem:[%s12]]
  %s14 = scalar_lea.smem %s0, 7
  %s15 = sld [smem:[%s14]]
  %s16 = scalar_lea.smem %s0, 8
  %s17 = sld [smem:[%s16]]
  %s18 = scalar_lea.smem %s0, 9
  %s19 = sld [smem:[%s18]]
  %s20 = scalar_lea.smem %s0, 10
  %s21 = sld [smem:[%s20]]
  %s22 = scalar_lea.smem %s0, 11
  %s23 = sld [smem:[%s22]]
  %s24 = scalar_lea.smem %s0, 12
  %s25 = sld [smem:[%s24]]
  %s26 = scalar_lea.smem %s0, 13
  %s27 = sld [smem:[%s26]]
  %s28 = scalar_lea.smem %s0, 14
  %s29 = sld [smem:[%s28]]
  %s30 = scalar_lea.smem %s0, 15
  %s31 = sld [smem:[%s30]]
  %s32 = scalar_lea.smem %s0, 16
  %s33 = sld [smem:[%s32]]
  %s34 = scalar_lea.smem %s0, 17
  %s35 = sld [smem:[%s34]]
  %s36 = scalar_lea.smem %s0, 18
  %s37 = sld [smem:[%s36]]
  %s38 = scalar_lea.smem %s0, 19
  %s39 = sld [smem:[%s38]]
  %s40 = scalar_lea.smem %s0, 20
  %s41 = sld [smem:[%s40]]
  %s42 = scalar_lea.smem %s0, 21
  %s43 = sld [smem:[%s42]]
  %s44 = scalar_lea.smem %s0, 22
  %s45 = sld [smem:[%s44]]
  %s46 = scalar_lea.smem %s0, 23
  %s47 = sld [smem:[%s46]]
  %s48 = scalar_lea.smem %s0, 24
  %s49 = sld [smem:[%s48]]
  %s50 = scalar_lea.smem %s0, 25
  %s51 = sld [smem:[%s50]]
  %s52 = scalar_lea.smem %s0, 26
  %s53 = sld [smem:[%s52]]
  %s54 = scalar_lea.smem %s0, 27
  %s55 = sld [smem:[%s54]]
  %s56 = scalar_lea.smem %s0, 28
  %s57 = sld [smem:[%s56]]
  %s58 = scalar_lea.smem %s0, 29
  %s59 = sld [smem:[%s58]]
  %s60 = scalar_lea.smem %s0, 30
  %s61 = sld [smem:[%s60]]
  %62 = xla_tuple %s53, %s55, %s57, %s59, %s61
  %s63 = sld [smem:[#allocation0]]
  $region206: #{forward.1} parent=0
    _
  %s65 = ssub.s32 1, %s63
  %s66 = scalar_select 0, %s65, %s63
  %v67 = vstv %s17
  %68 = vst [vmem:[#allocation2] sm:$0x1] %v67
  $region1: #{forward.1} parent=0
    #allocation3 [shape = 'u8[12288]{0}', space=vmem, size = 0x3000, scoped, tag = 'input window, operand 3, single buffered']
    #allocation4 [shape = 's32[1]{0}', space=sflag, size = 0x4, scoped, tag = 'scoped memory for forward.1']
    #allocation5 [shape = 's32[1]{0}', space=sflag, size = 0x4, scoped, tag = 'scoped memory for forward.1']
    #allocation6 [shape = 'u8[8192]{0}', space=vmem, size = 0x2000, scoped, tag = 'input window, operand 5, single buffered']
    #allocation7 [shape = 's32[1]{0}', space=sflag, size = 0x4, scoped, tag = 'scoped memory for forward.1']
    #allocation8 [shape = 'u8[4096]{0}', space=vmem, size = 0x1000, scoped, tag = 'input window, operand 7, single buffered']
    #allocation9 [shape = 'u8[1024]{0}', space=vmem, size = 0x400, scoped, tag = 'input window, operand 9, single buffered']
    #allocation10 [shape = 's32[1]{0}', space=sflag, size = 0x4, scoped, tag = 'scoped memory for forward.1']
    #allocation11 [shape = 'u8[512]{0}', space=vmem, size = 0x400, scoped, tag = 'input window, operand 11, single buffered']
    #allocation12 [shape = 'u8[1024]{0}', space=vmem, size = 0x400, scoped, tag = 'input window, operand 13, single buffered']
    #allocation13 [shape = 's32[1]{0}', space=sflag, size = 0x4, scoped, tag = 'scoped memory for forward.1']
    #allocation14 [shape = 'u8[512]{0}', space=vmem, size = 0x400, scoped, tag = 'input window, operand 14, single buffered']
    #allocation15 [shape = 'u8[512]{0}', space=vmem, size = 0x400, scoped, tag = 'input window, operand 18, single buffered']
    #allocation16 [shape = 's32[1]{0}', space=sflag, size = 0x4, scoped, tag = 'scoped memory for forward.1']
    #allocation17 [shape = 'u8[512]{0}', space=vmem, size = 0x400, scoped, tag = 'input window, operand 19, single buffered']
    #allocation18 [shape = 'u8[4096]{0}', space=vmem, size = 0x1000, scoped, tag = 'input window, operand 20, single buffered']
    #allocation19 [shape = 's32[1]{0}', space=sflag, size = 0x4, scoped, tag = 'scoped memory for forward.1']
    #allocation20 [shape = 'u8[512]{0}', space=vmem, size = 0x400, scoped, tag = 'input window, operand 21, single buffered']
    #allocation21 [shape = 'u8[8192]{0}', space=vmem, size = 0x2000, scoped, tag = 'input window, operand 22, single buffered']
    #allocation22 [shape = 's32[1]{0}', space=sflag, size = 0x4, scoped, tag = 'scoped memory for forward.1']
    #allocation23 [shape = 'u8[512]{0}', space=vmem, size = 0x400, scoped, tag = 'input window, operand 23, single buffered']
    #allocation24 [shape = 'u8[12288]{0}', space=vmem, size = 0x3000, scoped, tag = 'input window, operand 24, single buffered']
    #allocation25 [shape = 's32[1]{0}', space=sflag, size = 0x4, scoped, tag = 'scoped memory for forward.1']
    #allocation26 [shape = 'u8[512]{0}', space=vmem, size = 0x400, scoped, tag = 'input window, operand 25, single buffered']
    #allocation27 [shape = 'u8[1024]{0}', space=vmem, size = 0x400, scoped, tag = 'output window, operand 1, single buffered']
    #allocation28 [shape = 'u8[1024]{0}', space=vmem, size = 0x400, scoped, tag = 'output window, operand 2, single buffered']
    #allocation29 [shape = 's32[1]{0}', space=sflag, size = 0x4, scoped, tag = 'scoped memory for forward.1']
    %69 = vsyncpa [#allocation4], 0
    %70 = vsyncpa [#allocation7], 0
    %71 = vsyncpa [#allocation10], 0
    %72 = vsyncpa [#allocation13], 0
    %73 = vsyncpa [#allocation16], 0
    %74 = vsyncpa [#allocation19], 0
    %75 = vsyncpa [#allocation22], 0
    %76 = vsyncpa [#allocation25], 0
    %77 = vsyncpa [#allocation5], 0
    %78 = vsyncpa [#allocation29], 0
    // Predicated region
    $region2: #{forward.1} parent=1 // pred_check
      _
    $region3: #{forward.1} parent=1 // pred_check_branch
      %80 = sbr.rel (0) target = $region5
    $region4: #{forward.1} parent=1 // pred_region
      _
    $region5: #{forward.1} parent=1 // pred_fallthru
      _
    // Predicated region
    $region6: #{forward.1} parent=1 // pred_check
      _
    $region7: #{forward.1} parent=1 // pred_check_branch
      %82 = sbr.rel (0) target = $region9
    $region8: #{forward.1} parent=1 // pred_region
      _
    $region9: #{forward.1} parent=1 // pred_fallthru
      _
    // Predicated region
    $region10: #{forward.1} parent=1 // pred_check
      _
    $region11: #{forward.1} parent=1 // pred_check_branch
      %84 = sbr.rel (0) target = $region13
    $region12: #{forward.1} parent=1 // pred_region
      _
    $region13: #{forward.1} parent=1 // pred_fallthru
      _
    // Predicated region
    $region14: #{forward.1} parent=1 // pred_check
      _
    $region15: #{forward.1} parent=1 // pred_check_branch
      %86 = sbr.rel (0) target = $region17
    $region16: #{forward.1} parent=1 // pred_region
      %s88 = ssub.s32 384, 384
      %89 = vsyncadd [#allocation4], %s88
      %s90 = sshll.u32 [#allocation3], 4
      %s91 = int_to_ptr.vmem [resolvable:$true] %s90
      %96 = dma.hbm_to_vmem [thread:$0]  %s7, 384, %s91, [#allocation4], 128, 128, 8
    $region17: #{forward.1} parent=1 // pred_fallthru
      _
    // Predicated region
    $region18: #{forward.1} parent=1 // pred_check
      _
    $region19: #{forward.1} parent=1 // pred_check_branch
      %98 = sbr.rel (0) target = $region21
    $region20: #{forward.1} parent=1 // pred_region
      _
    $region21: #{forward.1} parent=1 // pred_fallthru
      _
    // Predicated region
    $region22: #{forward.1} parent=1 // pred_check
      _
    $region23: #{forward.1} parent=1 // pred_check_branch
      %100 = sbr.rel (0) target = $region25
    $region24: #{forward.1} parent=1 // pred_region
      %s102 = ssub.s32 256, 256
      %103 = vsyncadd [#allocation7], %s102
      %s104 = sshll.u32 [#allocation6], 4
      %s105 = int_to_ptr.vmem [resolvable:$true] %s104
      %110 = dma.hbm_to_vmem [thread:$0]  %s11, 256, %s105, [#allocation7], 128, 128, 8
    $region25: #{forward.1} parent=1 // pred_fallthru
      _
    // Predicated region
    $region26: #{forward.1} parent=1 // pred_check
      _
    $region27: #{forward.1} parent=1 // pred_check_branch
      %112 = sbr.rel (0) target = $region29
    $region28: #{forward.1} parent=1 // pred_region
      _
    $region29: #{forward.1} parent=1 // pred_fallthru
      _
    // Predicated region
    $region30: #{forward.1} parent=1 // pred_check
      _
    $region31: #{forward.1} parent=1 // pred_check_branch
      %114 = sbr.rel (0) target = $region33
    $region32: #{forward.1} parent=1 // pred_region
      %s116 = ssub.s32 128, 128
      %117 = vsyncadd [#allocation7], %s116
      %s119 = sshll.u32 [#allocation8], 4
      %s120 = int_to_ptr.vmem [resolvable:$true] %s119
      %122 = dma.hbm_to_vmem [thread:$0]  %s15, 128, %s120, [#allocation7]
    $region33: #{forward.1} parent=1 // pred_fallthru
      _
    // Predicated region
    $region34: #{forward.1} parent=1 // pred_check
      _
    $region35: #{forward.1} parent=1 // pred_check_branch
      %124 = sbr.rel (0) target = $region37
    $region36: #{forward.1} parent=1 // pred_region
      _
    $region37: #{forward.1} parent=1 // pred_fallthru
      _
    // Predicated region
    $region38: #{forward.1} parent=1 // pred_check
      _
    $region39: #{forward.1} parent=1 // pred_check_branch
      %126 = sbr.rel (0) target = $region41
    $region40: #{forward.1} parent=1 // pred_region
      %s128 = ssub.s32 32, 32
      %129 = vsyncadd [#allocation10], %s128
      %s131 = sshll.u32 [#allocation9], 4
      %s132 = int_to_ptr.vmem [resolvable:$true] %s131
      %134 = dma.hbm_to_vmem [thread:$0]  %s19, 32, %s132, [#allocation10]
    $region41: #{forward.1} parent=1 // pred_fallthru
      _
    // Predicated region
    $region42: #{forward.1} parent=1 // pred_check
      _
    $region43: #{forward.1} parent=1 // pred_check_branch
      %136 = sbr.rel (0) target = $region45
    $region44: #{forward.1} parent=1 // pred_region
      _
    $region45: #{forward.1} parent=1 // pred_fallthru
      _
    // Predicated region
    $region46: #{forward.1} parent=1 // pred_check
      _
    $region47: #{forward.1} parent=1 // pred_check_branch
      %138 = sbr.rel (0) target = $region49
    $region48: #{forward.1} parent=1 // pred_region
      %s140 = ssub.s32 16, 16
      %141 = vsyncadd [#allocation10], %s140
      %s143 = sshll.u32 [#allocation11], 4
      %s144 = int_to_ptr.vmem [resolvable:$true] %s143
      %146 = dma.hbm_to_vmem [thread:$0]  %s23, 16, %s144, [#allocation10]
    $region49: #{forward.1} parent=1 // pred_fallthru
      _
    // Predicated region
    $region50: #{forward.1} parent=1 // pred_check
      _
    $region51: #{forward.1} parent=1 // pred_check_branch
      %148 = sbr.rel (0) target = $region53
    $region52: #{forward.1} parent=1 // pred_region
      _
    $region53: #{forward.1} parent=1 // pred_fallthru
      _
    // Predicated region
    $region54: #{forward.1} parent=1 // pred_check
      _
    $region55: #{forward.1} parent=1 // pred_check_branch
      %150 = sbr.rel (0) target = $region57
    $region56: #{forward.1} parent=1 // pred_region
      %s152 = ssub.s32 32, 32
      %153 = vsyncadd [#allocation13], %s152
      %s155 = sshll.u32 [#allocation12], 4
      %s156 = int_to_ptr.vmem [resolvable:$true] %s155
      %158 = dma.hbm_to_vmem [thread:$0]  %s27, 32, %s156, [#allocation13]
    $region57: #{forward.1} parent=1 // pred_fallthru
      _
    // Predicated region
    $region58: #{forward.1} parent=1 // pred_check
      _
    $region59: #{forward.1} parent=1 // pred_check_branch
      %160 = sbr.rel (0) target = $region61
    $region60: #{forward.1} parent=1 // pred_region
      %s162 = ssub.s32 16, 16
      %163 = vsyncadd [#allocation13], %s162
      %s165 = sshll.u32 [#allocation14], 4
      %s166 = int_to_ptr.vmem [resolvable:$true] %s165
      %168 = dma.hbm_to_vmem [thread:$0]  %s29, 16, %s166, [#allocation13]
    $region61: #{forward.1} parent=1 // pred_fallthru
      _
    // Predicated region
    $region62: #{forward.1} parent=1 // pred_check
      _
    $region63: #{forward.1} parent=1 // pred_check_branch
      %170 = sbr.rel (0) target = $region65
    $region64: #{forward.1} parent=1 // pred_region
      _
    $region65: #{forward.1} parent=1 // pred_fallthru
      _
    // Predicated region
    $region66: #{forward.1} parent=1 // pred_check
      _
    $region67: #{forward.1} parent=1 // pred_check_branch
      %172 = sbr.rel (0) target = $region69
    $region68: #{forward.1} parent=1 // pred_region
      _
    $region69: #{forward.1} parent=1 // pred_fallthru
      _
    // Predicated region
    $region70: #{forward.1} parent=1 // pred_check
      _
    $region71: #{forward.1} parent=1 // pred_check_branch
      %174 = sbr.rel (0) target = $region73
    $region72: #{forward.1} parent=1 // pred_region
      _
    $region73: #{forward.1} parent=1 // pred_fallthru
      _
    // Predicated region
    $region74: #{forward.1} parent=1 // pred_check
      _
    $region75: #{forward.1} parent=1 // pred_check_branch
      %176 = sbr.rel (0) target = $region77
    $region76: #{forward.1} parent=1 // pred_region
      %s178 = ssub.s32 16, 16
      %179 = vsyncadd [#allocation16], %s178
      %s181 = sshll.u32 [#allocation15], 4
      %s182 = int_to_ptr.vmem [resolvable:$true] %s181
      %184 = dma.hbm_to_vmem [thread:$0]  %s37, 16, %s182, [#allocation16]
    $region77: #{forward.1} parent=1 // pred_fallthru
      _
    // Predicated region
    $region78: #{forward.1} parent=1 // pred_check
      _
    $region79: #{forward.1} parent=1 // pred_check_branch
      %186 = sbr.rel (0) target = $region81
    $region80: #{forward.1} parent=1 // pred_region
      %s188 = ssub.s32 16, 16
      %189 = vsyncadd [#allocation16], %s188
      %s191 = sshll.u32 [#allocation17], 4
      %s192 = int_to_ptr.vmem [resolvable:$true] %s191
      %194 = dma.hbm_to_vmem [thread:$0]  %s39, 16, %s192, [#allocation16]
    $region81: #{forward.1} parent=1 // pred_fallthru
      _
    // Predicated region
    $region82: #{forward.1} parent=1 // pred_check
      _
    $region83: #{forward.1} parent=1 // pred_check_branch
      %196 = sbr.rel (0) target = $region85
    $region84: #{forward.1} parent=1 // pred_region
      %s198 = ssub.s32 128, 128
      %199 = vsyncadd [#allocation19], %s198
      %s201 = sshll.u32 [#allocation18], 4
      %s202 = int_to_ptr.vmem [resolvable:$true] %s201
      %204 = dma.hbm_to_vmem [thread:$0]  %s41, 128, %s202, [#allocation19]
    $region85: #{forward.1} parent=1 // pred_fallthru
      _
    // Predicated region
    $region86: #{forward.1} parent=1 // pred_check
      _
    $region87: #{forward.1} parent=1 // pred_check_branch
      %206 = sbr.rel (0) target = $region89
    $region88: #{forward.1} parent=1 // pred_region
      %s208 = ssub.s32 16, 16
      %209 = vsyncadd [#allocation19], %s208
      %s211 = sshll.u32 [#allocation20], 4
      %s212 = int_to_ptr.vmem [resolvable:$true] %s211
      %214 = dma.hbm_to_vmem [thread:$0]  %s43, 16, %s212, [#allocation19]
    $region89: #{forward.1} parent=1 // pred_fallthru
      _
    // Predicated region
    $region90: #{forward.1} parent=1 // pred_check
      _
    $region91: #{forward.1} parent=1 // pred_check_branch
      %216 = sbr.rel (0) target = $region93
    $region92: #{forward.1} parent=1 // pred_region
      %s218 = ssub.s32 256, 256
      %219 = vsyncadd [#allocation22], %s218
      %s220 = sshll.u32 [#allocation21], 4
      %s221 = int_to_ptr.vmem [resolvable:$true] %s220
      %226 = dma.hbm_to_vmem [thread:$0]  %s45, 256, %s221, [#allocation22], 128, 128, 8
    $region93: #{forward.1} parent=1 // pred_fallthru
      _
    // Predicated region
    $region94: #{forward.1} parent=1 // pred_check
      _
    $region95: #{forward.1} parent=1 // pred_check_branch
      %228 = sbr.rel (0) target = $region97
    $region96: #{forward.1} parent=1 // pred_region
      %s230 = ssub.s32 16, 16
      %231 = vsyncadd [#allocation22], %s230
      %s233 = sshll.u32 [#allocation23], 4
      %s234 = int_to_ptr.vmem [resolvable:$true] %s233
      %236 = dma.hbm_to_vmem [thread:$0]  %s47, 16, %s234, [#allocation22]
    $region97: #{forward.1} parent=1 // pred_fallthru
      _
    // Predicated region
    $region98: #{forward.1} parent=1 // pred_check
      _
    $region99: #{forward.1} parent=1 // pred_check_branch
      %238 = sbr.rel (0) target = $region101
    $region100: #{forward.1} parent=1 // pred_region
      %s240 = ssub.s32 384, 384
      %241 = vsyncadd [#allocation25], %s240
      %s242 = sshll.u32 [#allocation24], 4
      %s243 = int_to_ptr.vmem [resolvable:$true] %s242
      %248 = dma.hbm_to_vmem [thread:$0]  %s49, 384, %s243, [#allocation25], 128, 128, 8
    $region101: #{forward.1} parent=1 // pred_fallthru
      _
    // Predicated region
    $region102: #{forward.1} parent=1 // pred_check
      _
    $region103: #{forward.1} parent=1 // pred_check_branch
      %250 = sbr.rel (0) target = $region105
    $region104: #{forward.1} parent=1 // pred_region
      %s252 = ssub.s32 16, 16
      %253 = vsyncadd [#allocation25], %s252
      %s255 = sshll.u32 [#allocation26], 4
      %s256 = int_to_ptr.vmem [resolvable:$true] %s255
      %258 = dma.hbm_to_vmem [thread:$0]  %s51, 16, %s256, [#allocation25]
    $region105: #{forward.1} parent=1 // pred_fallthru
      _
    // Predicated region
    $region106: #{forward.1} parent=1 // pred_check
      _
    $region107: #{forward.1} parent=1 // pred_check_branch
      %260 = sbr.rel (0) target = $region109
    $region108: #{forward.1} parent=1 // pred_region
      %261 = dma.done [#allocation4], 384
    $region109: #{forward.1} parent=1 // pred_fallthru
      _
    // Predicated region
    $region110: #{forward.1} parent=1 // pred_check
      _
    $region111: #{forward.1} parent=1 // pred_check_branch
      %263 = sbr.rel (0) target = $region113
    $region112: #{forward.1} parent=1 // pred_region
      %264 = dma.done [#allocation7], 256
    $region113: #{forward.1} parent=1 // pred_fallthru
      _
    // Predicated region
    $region114: #{forward.1} parent=1 // pred_check
      _
    $region115: #{forward.1} parent=1 // pred_check_branch
      %266 = sbr.rel (0) target = $region117
    $region116: #{forward.1} parent=1 // pred_region
      %267 = dma.done [#allocation7], 128
    $region117: #{forward.1} parent=1 // pred_fallthru
      _
    // Predicated region
    $region118: #{forward.1} parent=1 // pred_check
      _
    $region119: #{forward.1} parent=1 // pred_check_branch
      %269 = sbr.rel (0) target = $region121
    $region120: #{forward.1} parent=1 // pred_region
      %270 = dma.done [#allocation10], 32
    $region121: #{forward.1} parent=1 // pred_fallthru
      _
    // Predicated region
    $region122: #{forward.1} parent=1 // pred_check
      _
    $region123: #{forward.1} parent=1 // pred_check_branch
      %272 = sbr.rel (0) target = $region125
    $region124: #{forward.1} parent=1 // pred_region
      %273 = dma.done [#allocation10], 16
    $region125: #{forward.1} parent=1 // pred_fallthru
      _
    // Predicated region
    $region126: #{forward.1} parent=1 // pred_check
      _
    $region127: #{forward.1} parent=1 // pred_check_branch
      %275 = sbr.rel (0) target = $region129
    $region128: #{forward.1} parent=1 // pred_region
      %276 = dma.done [#allocation13], 32
    $region129: #{forward.1} parent=1 // pred_fallthru
      _
    // Predicated region
    $region130: #{forward.1} parent=1 // pred_check
      _
    $region131: #{forward.1} parent=1 // pred_check_branch
      %278 = sbr.rel (0) target = $region133
    $region132: #{forward.1} parent=1 // pred_region
      %279 = dma.done [#allocation13], 16
    $region133: #{forward.1} parent=1 // pred_fallthru
      _
    // Predicated region
    $region134: #{forward.1} parent=1 // pred_check
      _
    $region135: #{forward.1} parent=1 // pred_check_branch
      %281 = sbr.rel (0) target = $region137
    $region136: #{forward.1} parent=1 // pred_region
      %282 = dma.done [#allocation16], 16
    $region137: #{forward.1} parent=1 // pred_fallthru
      _
    // Predicated region
    $region138: #{forward.1} parent=1 // pred_check
      _
    $region139: #{forward.1} parent=1 // pred_check_branch
      %284 = sbr.rel (0) target = $region141
    $region140: #{forward.1} parent=1 // pred_region
      %285 = dma.done [#allocation16], 16
    $region141: #{forward.1} parent=1 // pred_fallthru
      _
    // Predicated region
    $region142: #{forward.1} parent=1 // pred_check
      _
    $region143: #{forward.1} parent=1 // pred_check_branch
      %287 = sbr.rel (0) target = $region145
    $region144: #{forward.1} parent=1 // pred_region
      %288 = dma.done [#allocation19], 128
    $region145: #{forward.1} parent=1 // pred_fallthru
      _
    // Predicated region
    $region146: #{forward.1} parent=1 // pred_check
      _
    $region147: #{forward.1} parent=1 // pred_check_branch
      %290 = sbr.rel (0) target = $region149
    $region148: #{forward.1} parent=1 // pred_region
      %291 = dma.done [#allocation19], 16
    $region149: #{forward.1} parent=1 // pred_fallthru
      _
    // Predicated region
    $region150: #{forward.1} parent=1 // pred_check
      _
    $region151: #{forward.1} parent=1 // pred_check_branch
      %293 = sbr.rel (0) target = $region153
    $region152: #{forward.1} parent=1 // pred_region
      %294 = dma.done [#allocation22], 256
    $region153: #{forward.1} parent=1 // pred_fallthru
      _
    // Predicated region
    $region154: #{forward.1} parent=1 // pred_check
      _
    $region155: #{forward.1} parent=1 // pred_check_branch
      %296 = sbr.rel (0) target = $region157
    $region156: #{forward.1} parent=1 // pred_region
      %297 = dma.done [#allocation22], 16
    $region157: #{forward.1} parent=1 // pred_fallthru
      _
    // Predicated region
    $region158: #{forward.1} parent=1 // pred_check
      _
    $region159: #{forward.1} parent=1 // pred_check_branch
      %299 = sbr.rel (0) target = $region161
    $region160: #{forward.1} parent=1 // pred_region
      %300 = dma.done [#allocation25], 384
    $region161: #{forward.1} parent=1 // pred_fallthru
      _
    // Predicated region
    $region162: #{forward.1} parent=1 // pred_check
      _
    $region163: #{forward.1} parent=1 // pred_check_branch
      %302 = sbr.rel (0) target = $region165
    $region164: #{forward.1} parent=1 // pred_region
      %303 = dma.done [#allocation25], 16
    $region165: #{forward.1} parent=1 // pred_fallthru
      _
    %v304 = vld [vmem:[%s1] sm:$0xff]
    %v305 = vld [vmem:[%s1 + $0x8] sm:$0xff]
    %v306 = vld [vmem:[%s1 + $0x10] sm:$0xff]
    %v307 = vld [vmem:[%s1 + $0x18] sm:$0xff]
    %v308 = vld [vmem:[%s1 + $0x20] sm:$0xff]
    %v309 = vld [vmem:[%s3] sm:$0xff]
    %v310 = vld [vmem:[%s3 + $0x8] sm:$0xff]
    %v311 = vld [vmem:[%s3 + $0x10] sm:$0xff]
    %v312 = vld [vmem:[%s3 + $0x18] sm:$0xff]
    %v313 = vld [vmem:[%s5] sm:$0x1]
    %v315 = vlaneseq
    %v316 = vshrl.u32 %v315, 7
    %v317 = vsub.s32 0, %v316
    %v318 = vrot.slane %v313, %v317
    %vm320 = vcmask 261120
    %v322 = vsel %vm320, %v304, 0
    %v325 = vsel %vm320, %v305, 0
    %v328 = vsel %vm320, %v306, 0
    %v331 = vsel %vm320, %v307, 0
    %v334 = vsel %vm320, %v308, 0
    %336 = vmatprep.subr.mxu0 0.0
    %337 = vmatpush1.msra.mxu0 0.0
    %338 = vmatprep.subr.mxu0 0.0
    %339 = vmatpush1.msra.mxu0 0.0
    %340 = vmatprep.subr.mxu0 0.0
    %341 = vmatpush1.msra.mxu0 0.0
    %342 = vmatprep.subr.mxu0 0.0
    %343 = vmatpush1.msra.mxu0 0.0
    %344 = vmatprep.subr.mxu0 0.0
    %345 = vmatpush1.msra.mxu0 0.0
    %346 = vmatprep.subr.mxu0 0.0
    %347 = vmatpush1.msra.mxu0 0.0
    %348 = vmatprep.subr.mxu0 0.0
    %349 = vmatpush1.msra.mxu0 0.0
    %350 = vmatprep.subr.mxu0 0.0
    %351 = vmatpush1.msra.mxu0 0.0
    %352 = vmatprep.subr.mxu0 0.0
    %353 = vmatpush1.msra.mxu0 0.0
    %354 = vmatprep.subr.mxu0 0.0
    %355 = vmatpush1.msra.mxu0 0.0
    %356 = vmatprep.subr.mxu0 0.0
    %357 = vmatpush1.msra.mxu0 0.0
    %358 = vmatprep.subr.mxu0 0.0
    %359 = vmatpush1.msra.mxu0 0.0
    %360 = vmatprep.subr.mxu0 0.0
    %361 = vmatpush1.msra.mxu0 %v312
    %362 = vmatprep.subr.mxu0 0.0
    %363 = vmatpush1.msra.mxu0 %v311
    %364 = vmatprep.subr.mxu0 0.0
    %365 = vmatpush1.msra.mxu0 %v310
    %366 = vmatprep.subr.mxu0 0.0
    %367 = vmatpush1.msra.mxu0 %v309
    %368 = vmatprep.subr.mxu0 0.0
    %369 = vmatpush2.msra.mxu0 0.0
    %370 = vmatprep.subr.mxu0 0.0
    %371 = vmatpush2.msra.mxu0 0.0
    %372 = vmatprep.subr.mxu0 0.0
    %373 = vmatpush2.msra.mxu0 0.0
    %374 = vmatprep.subr.mxu0 0.0
    %375 = vmatpush2.msra.mxu0 0.0
    %376 = vmatprep.subr.mxu0 0.0
    %377 = vmatpush2.msra.mxu0 0.0
    %378 = vmatprep.subr.mxu0 0.0
    %379 = vmatpush2.msra.mxu0 0.0
    %380 = vmatprep.subr.mxu0 0.0
    %381 = vmatpush2.msra.mxu0 0.0
    %382 = vmatprep.subr.mxu0 0.0
    %383 = vmatpush2.msra.mxu0 0.0
    %384 = vmatprep.subr.mxu0 0.0
    %385 = vmatpush2.msra.mxu0 0.0
    %386 = vmatprep.subr.mxu0 0.0
    %387 = vmatpush2.msra.mxu0 0.0
    %388 = vmatprep.subr.mxu0 0.0
    %389 = vmatpush2.msra.mxu0 0.0
    %390 = vmatprep.subr.mxu0 0.0
    %391 = vmatpush2.msra.mxu0 0.0
    %392 = vmatprep.subr.mxu0 0.0
    %393 = vmatpush2.msra.mxu0 0.0
    %394 = vmatprep.subr.mxu0 0.0
    %395 = vmatpush2.msra.mxu0 0.0
    %396 = vmatprep.subr.mxu0 0.0
    %397 = vmatpush2.msra.mxu0 0.0
    %398 = vmatprep.subr.mxu0 0.0
    %399 = vmatpush2.msra.mxu0 0.0
    %400 = vmatprep.mubr.f32.mxu0 0.0
    %401 = vmatmul.mubr.f32.gmra.mxu0 %v322
    %v402 = vpop.f32.mrf.mxu0
    %v403 = vadd.f32 %v318, %v402
    %v404 = vpop.f32.mrf.mxu0
    %405 = vmatprep.mubr.f32.mxu0 0.0
    %406 = vmatmul.mubr.f32.gmra.mxu0 %v325
    %v407 = vpop.f32.mrf.mxu0
    %v408 = vadd.f32 %v318, %v407
    %v409 = vpop.f32.mrf.mxu0
    %410 = vmatprep.mubr.f32.mxu0 0.0
    %411 = vmatmul.mubr.f32.gmra.mxu0 %v328
    %v412 = vpop.f32.mrf.mxu0
    %v413 = vadd.f32 %v318, %v412
    %v414 = vpop.f32.mrf.mxu0
    %415 = vmatprep.mubr.f32.mxu0 0.0
    %416 = vmatmul.mubr.f32.gmra.mxu0 %v331
    %v417 = vpop.f32.mrf.mxu0
    %v418 = vadd.f32 %v318, %v417
    %v419 = vpop.f32.mrf.mxu0
    %420 = vmatprep.mubr.f32.mxu0 0.0
    %421 = vmatmul.mubr.f32.gmra.mxu0 %v334
    %v422 = vpop.f32.mrf.mxu0
    %v423 = vadd.f32 %v318, %v422
    %v424 = vpop.f32.mrf.mxu0
    %425 = vdwg.mxu0
    %v426 = vld [vmem:[#allocation3] sm:$0xff]
    %v427 = vld [vmem:[#allocation3 + $0x8] sm:$0xff]
    %v428 = vld [vmem:[#allocation3 + $0x10] sm:$0xff]
    %v429 = vld [vmem:[%s9] sm:$0x1]
    %v431 = vlaneseq
    %v432 = vshrl.u32 %v431, 7
    %v433 = vsub.s32 0, %v432
    %v434 = vrot.slane %v429, %v433
    %vm436 = vcmask 195584
    %v438 = vsel %vm436, %v403, 0
    %v441 = vsel %vm436, %v408, 0
    %v444 = vsel %vm436, %v413, 0
    %v447 = vsel %vm436, %v418, 0
    %v450 = vsel %vm436, %v423, 0
    %452 = vmatprep.subr.mxu0 0.0
    %453 = vmatpush1.msra.mxu0 0.0
    %454 = vmatprep.subr.mxu0 0.0
    %455 = vmatpush1.msra.mxu0 0.0
    %456 = vmatprep.subr.mxu0 0.0
    %457 = vmatpush1.msra.mxu0 0.0
    %458 = vmatprep.subr.mxu0 0.0
    %459 = vmatpush1.msra.mxu0 0.0
    %460 = vmatprep.subr.mxu0 0.0
    %461 = vmatpush1.msra.mxu0 0.0
    %462 = vmatprep.subr.mxu0 0.0
    %463 = vmatpush1.msra.mxu0 0.0
    %464 = vmatprep.subr.mxu0 0.0
    %465 = vmatpush1.msra.mxu0 0.0
    %466 = vmatprep.subr.mxu0 0.0
    %467 = vmatpush1.msra.mxu0 0.0
    %468 = vmatprep.subr.mxu0 0.0
    %469 = vmatpush1.msra.mxu0 0.0
    %470 = vmatprep.subr.mxu0 0.0
    %471 = vmatpush1.msra.mxu0 0.0
    %472 = vmatprep.subr.mxu0 0.0
    %473 = vmatpush1.msra.mxu0 0.0
    %474 = vmatprep.subr.mxu0 0.0
    %475 = vmatpush1.msra.mxu0 0.0
    %476 = vmatprep.subr.mxu0 0.0
    %477 = vmatpush1.msra.mxu0 0.0
    %478 = vmatprep.subr.mxu0 0.0
    %479 = vmatpush1.msra.mxu0 %v428
    %480 = vmatprep.subr.mxu0 0.0
    %481 = vmatpush1.msra.mxu0 %v427
    %482 = vmatprep.subr.mxu0 0.0
    %483 = vmatpush1.msra.mxu0 %v426
    %484 = vmatprep.subr.mxu0 0.0
    %485 = vmatpush2.msra.mxu0 0.0
    %486 = vmatprep.subr.mxu0 0.0
    %487 = vmatpush2.msra.mxu0 0.0
    %488 = vmatprep.subr.mxu0 0.0
    %489 = vmatpush2.msra.mxu0 0.0
    %490 = vmatprep.subr.mxu0 0.0
    %491 = vmatpush2.msra.mxu0 0.0
    %492 = vmatprep.subr.mxu0 0.0
    %493 = vmatpush2.msra.mxu0 0.0
    %494 = vmatprep.subr.mxu0 0.0
    %495 = vmatpush2.msra.mxu0 0.0
    %496 = vmatprep.subr.mxu0 0.0
    %497 = vmatpush2.msra.mxu0 0.0
    %498 = vmatprep.subr.mxu0 0.0
    %499 = vmatpush2.msra.mxu0 0.0
    %500 = vmatprep.subr.mxu0 0.0
    %501 = vmatpush2.msra.mxu0 0.0
    %502 = vmatprep.subr.mxu0 0.0
    %503 = vmatpush2.msra.mxu0 0.0
    %504 = vmatprep.subr.mxu0 0.0
    %505 = vmatpush2.msra.mxu0 0.0
    %506 = vmatprep.subr.mxu0 0.0
    %507 = vmatpush2.msra.mxu0 0.0
    %508 = vmatprep.subr.mxu0 0.0
    %509 = vmatpush2.msra.mxu0 0.0
    %510 = vmatprep.subr.mxu0 0.0
    %511 = vmatpush2.msra.mxu0 0.0
    %512 = vmatprep.subr.mxu0 0.0
    %513 = vmatpush2.msra.mxu0 0.0
    %514 = vmatprep.subr.mxu0 0.0
    %515 = vmatpush2.msra.mxu0 0.0
    %516 = vmatprep.mubr.f32.mxu0 0.0
    %517 = vmatmul.mubr.f32.gmra.mxu0 %v438
    %v518 = vpop.f32.mrf.mxu0
    %v519 = vadd.f32 %v434, %v518
    %v520 = vpop.f32.mrf.mxu0
    %521 = vmatprep.mubr.f32.mxu0 0.0
    %522 = vmatmul.mubr.f32.gmra.mxu0 %v441
    %v523 = vpop.f32.mrf.mxu0
    %v524 = vadd.f32 %v434, %v523
    %v525 = vpop.f32.mrf.mxu0
    %526 = vmatprep.mubr.f32.mxu0 0.0
    %527 = vmatmul.mubr.f32.gmra.mxu0 %v444
    %v528 = vpop.f32.mrf.mxu0
    %v529 = vadd.f32 %v434, %v528
    %v530 = vpop.f32.mrf.mxu0
    %531 = vmatprep.mubr.f32.mxu0 0.0
    %532 = vmatmul.mubr.f32.gmra.mxu0 %v447
    %v533 = vpop.f32.mrf.mxu0
    %v534 = vadd.f32 %v434, %v533
    %v535 = vpop.f32.mrf.mxu0
    %536 = vmatprep.mubr.f32.mxu0 0.0
    %537 = vmatmul.mubr.f32.gmra.mxu0 %v450
    %v538 = vpop.f32.mrf.mxu0
    %v539 = vadd.f32 %v434, %v538
    %v540 = vpop.f32.mrf.mxu0
    %541 = vdwg.mxu0
    %v542 = vld [vmem:[#allocation6] sm:$0xff]
    %v543 = vld [vmem:[#allocation6 + $0x8] sm:$0xff]
    %v544 = vld [vmem:[%s13] sm:$0x1]
    %v546 = vlaneseq
    %v547 = vshrl.u32 %v546, 7
    %v548 = vsub.s32 0, %v547
    %v549 = vrot.slane %v544, %v548
    %vm551 = vcmask 130048
    %v553 = vsel %vm551, %v519, 0
    %v556 = vsel %vm551, %v524, 0
    %v559 = vsel %vm551, %v529, 0
    %v562 = vsel %vm551, %v534, 0
    %v565 = vsel %vm551, %v539, 0
    %567 = vmatprep.subr.mxu0 0.0
    %568 = vmatpush1.msra.mxu0 0.0
    %569 = vmatprep.subr.mxu0 0.0
    %570 = vmatpush1.msra.mxu0 0.0
    %571 = vmatprep.subr.mxu0 0.0
    %572 = vmatpush1.msra.mxu0 0.0
    %573 = vmatprep.subr.mxu0 0.0
    %574 = vmatpush1.msra.mxu0 0.0
    %575 = vmatprep.subr.mxu0 0.0
    %576 = vmatpush1.msra.mxu0 0.0
    %577 = vmatprep.subr.mxu0 0.0
    %578 = vmatpush1.msra.mxu0 0.0
    %579 = vmatprep.subr.mxu0 0.0
    %580 = vmatpush1.msra.mxu0 0.0
    %581 = vmatprep.subr.mxu0 0.0
    %582 = vmatpush1.msra.mxu0 0.0
    %583 = vmatprep.subr.mxu0 0.0
    %584 = vmatpush1.msra.mxu0 0.0
    %585 = vmatprep.subr.mxu0 0.0
    %586 = vmatpush1.msra.mxu0 0.0
    %587 = vmatprep.subr.mxu0 0.0
    %588 = vmatpush1.msra.mxu0 0.0
    %589 = vmatprep.subr.mxu0 0.0
    %590 = vmatpush1.msra.mxu0 0.0
    %591 = vmatprep.subr.mxu0 0.0
    %592 = vmatpush1.msra.mxu0 0.0
    %593 = vmatprep.subr.mxu0 0.0
    %594 = vmatpush1.msra.mxu0 0.0
    %595 = vmatprep.subr.mxu0 0.0
    %596 = vmatpush1.msra.mxu0 %v543
    %597 = vmatprep.subr.mxu0 0.0
    %598 = vmatpush1.msra.mxu0 %v542
    %599 = vmatprep.subr.mxu0 0.0
    %600 = vmatpush2.msra.mxu0 0.0
    %601 = vmatprep.subr.mxu0 0.0
    %602 = vmatpush2.msra.mxu0 0.0
    %603 = vmatprep.subr.mxu0 0.0
    %604 = vmatpush2.msra.mxu0 0.0
    %605 = vmatprep.subr.mxu0 0.0
    %606 = vmatpush2.msra.mxu0 0.0
    %607 = vmatprep.subr.mxu0 0.0
    %608 = vmatpush2.msra.mxu0 0.0
    %609 = vmatprep.subr.mxu0 0.0
    %610 = vmatpush2.msra.mxu0 0.0
    %611 = vmatprep.subr.mxu0 0.0
    %612 = vmatpush2.msra.mxu0 0.0
    %613 = vmatprep.subr.mxu0 0.0
    %614 = vmatpush2.msra.mxu0 0.0
    %615 = vmatprep.subr.mxu0 0.0
    %616 = vmatpush2.msra.mxu0 0.0
    %617 = vmatprep.subr.mxu0 0.0
    %618 = vmatpush2.msra.mxu0 0.0
    %619 = vmatprep.subr.mxu0 0.0
    %620 = vmatpush2.msra.mxu0 0.0
    %621 = vmatprep.subr.mxu0 0.0
    %622 = vmatpush2.msra.mxu0 0.0
    %623 = vmatprep.subr.mxu0 0.0
    %624 = vmatpush2.msra.mxu0 0.0
    %625 = vmatprep.subr.mxu0 0.0
    %626 = vmatpush2.msra.mxu0 0.0
    %627 = vmatprep.subr.mxu0 0.0
    %628 = vmatpush2.msra.mxu0 0.0
    %629 = vmatprep.subr.mxu0 0.0
    %630 = vmatpush2.msra.mxu0 0.0
    %631 = vmatprep.mubr.f32.mxu0 0.0
    %632 = vmatmul.mubr.f32.gmra.mxu0 %v553
    %v633 = vpop.f32.mrf.mxu0
    %v634 = vadd.f32 %v549, %v633
    %v635 = vpop.f32.mrf.mxu0
    %636 = vmatprep.mubr.f32.mxu0 0.0
    %637 = vmatmul.mubr.f32.gmra.mxu0 %v556
    %v638 = vpop.f32.mrf.mxu0
    %v639 = vadd.f32 %v549, %v638
    %v640 = vpop.f32.mrf.mxu0
    %641 = vmatprep.mubr.f32.mxu0 0.0
    %642 = vmatmul.mubr.f32.gmra.mxu0 %v559
    %v643 = vpop.f32.mrf.mxu0
    %v644 = vadd.f32 %v549, %v643
    %v645 = vpop.f32.mrf.mxu0
    %646 = vmatprep.mubr.f32.mxu0 0.0
    %647 = vmatmul.mubr.f32.gmra.mxu0 %v562
    %v648 = vpop.f32.mrf.mxu0
    %v649 = vadd.f32 %v549, %v648
    %v650 = vpop.f32.mrf.mxu0
    %651 = vmatprep.mubr.f32.mxu0 0.0
    %652 = vmatmul.mubr.f32.gmra.mxu0 %v565
    %v653 = vpop.f32.mrf.mxu0
    %v654 = vadd.f32 %v549, %v653
    %v655 = vpop.f32.mrf.mxu0
    %656 = vdwg.mxu0
    %v657 = vld [vmem:[#allocation8] sm:$0xff]
    %v658 = vld [vmem:[#allocation2] sm:$0x1]
    %v660 = vlaneseq
    %v661 = vshrl.u32 %v660, 7
    %v662 = vsub.s32 0, %v661
    %v663 = vrot.slane %v658, %v662
    %vm665 = vcmask 64512
    %v667 = vsel %vm665, %v634, 0
    %v670 = vsel %vm665, %v639, 0
    %v673 = vsel %vm665, %v644, 0
    %v676 = vsel %vm665, %v649, 0
    %v679 = vsel %vm665, %v654, 0
    %681 = vmatprep.subr.mxu0 0.0
    %682 = vmatpush1.msra.mxu0 0.0
    %683 = vmatprep.subr.mxu0 0.0
    %684 = vmatpush1.msra.mxu0 0.0
    %685 = vmatprep.subr.mxu0 0.0
    %686 = vmatpush1.msra.mxu0 0.0
    %687 = vmatprep.subr.mxu0 0.0
    %688 = vmatpush1.msra.mxu0 0.0
    %689 = vmatprep.subr.mxu0 0.0
    %690 = vmatpush1.msra.mxu0 0.0
    %691 = vmatprep.subr.mxu0 0.0
    %692 = vmatpush1.msra.mxu0 0.0
    %693 = vmatprep.subr.mxu0 0.0
    %694 = vmatpush1.msra.mxu0 0.0
    %695 = vmatprep.subr.mxu0 0.0
    %696 = vmatpush1.msra.mxu0 0.0
    %697 = vmatprep.subr.mxu0 0.0
    %698 = vmatpush1.msra.mxu0 0.0
    %699 = vmatprep.subr.mxu0 0.0
    %700 = vmatpush1.msra.mxu0 0.0
    %701 = vmatprep.subr.mxu0 0.0
    %702 = vmatpush1.msra.mxu0 0.0
    %703 = vmatprep.subr.mxu0 0.0
    %704 = vmatpush1.msra.mxu0 0.0
    %705 = vmatprep.subr.mxu0 0.0
    %706 = vmatpush1.msra.mxu0 0.0
    %707 = vmatprep.subr.mxu0 0.0
    %708 = vmatpush1.msra.mxu0 0.0
    %709 = vmatprep.subr.mxu0 0.0
    %710 = vmatpush1.msra.mxu0 0.0
    %711 = vmatprep.subr.mxu0 0.0
    %712 = vmatpush1.msra.mxu0 %v657
    %713 = vmatprep.subr.mxu0 0.0
    %714 = vmatpush2.msra.mxu0 0.0
    %715 = vmatprep.subr.mxu0 0.0
    %716 = vmatpush2.msra.mxu0 0.0
    %717 = vmatprep.subr.mxu0 0.0
    %718 = vmatpush2.msra.mxu0 0.0
    %719 = vmatprep.subr.mxu0 0.0
    %720 = vmatpush2.msra.mxu0 0.0
    %721 = vmatprep.subr.mxu0 0.0
    %722 = vmatpush2.msra.mxu0 0.0
    %723 = vmatprep.subr.mxu0 0.0
    %724 = vmatpush2.msra.mxu0 0.0
    %725 = vmatprep.subr.mxu0 0.0
    %726 = vmatpush2.msra.mxu0 0.0
    %727 = vmatprep.subr.mxu0 0.0
    %728 = vmatpush2.msra.mxu0 0.0
    %729 = vmatprep.subr.mxu0 0.0
    %730 = vmatpush2.msra.mxu0 0.0
    %731 = vmatprep.subr.mxu0 0.0
    %732 = vmatpush2.msra.mxu0 0.0
    %733 = vmatprep.subr.mxu0 0.0
    %734 = vmatpush2.msra.mxu0 0.0
    %735 = vmatprep.subr.mxu0 0.0
    %736 = vmatpush2.msra.mxu0 0.0
    %737 = vmatprep.subr.mxu0 0.0
    %738 = vmatpush2.msra.mxu0 0.0
    %739 = vmatprep.subr.mxu0 0.0
    %740 = vmatpush2.msra.mxu0 0.0
    %741 = vmatprep.subr.mxu0 0.0
    %742 = vmatpush2.msra.mxu0 0.0
    %743 = vmatprep.subr.mxu0 0.0
    %744 = vmatpush2.msra.mxu0 0.0
    %745 = vmatprep.mubr.f32.mxu0 0.0
    %746 = vmatmul.mubr.f32.gmra.mxu0 %v667
    %v747 = vpop.f32.mrf.mxu0
    %v748 = vadd.f32 %v663, %v747
    %v749 = vpop.f32.mrf.mxu0
    %750 = vmatprep.mubr.f32.mxu0 0.0
    %751 = vmatmul.mubr.f32.gmra.mxu0 %v670
    %v752 = vpop.f32.mrf.mxu0
    %v753 = vadd.f32 %v663, %v752
    %v754 = vpop.f32.mrf.mxu0
    %755 = vmatprep.mubr.f32.mxu0 0.0
    %756 = vmatmul.mubr.f32.gmra.mxu0 %v673
    %v757 = vpop.f32.mrf.mxu0
    %v758 = vadd.f32 %v663, %v757
    %v759 = vpop.f32.mrf.mxu0
    %760 = vmatprep.mubr.f32.mxu0 0.0
    %761 = vmatmul.mubr.f32.gmra.mxu0 %v676
    %v762 = vpop.f32.mrf.mxu0
    %v763 = vadd.f32 %v663, %v762
    %v764 = vpop.f32.mrf.mxu0
    %765 = vmatprep.mubr.f32.mxu0 0.0
    %766 = vmatmul.mubr.f32.gmra.mxu0 %v679
    %v767 = vpop.f32.mrf.mxu0
    %v768 = vadd.f32 %v663, %v767
    %v769 = vpop.f32.mrf.mxu0
    %770 = vdwg.mxu0
    %v771 = vld [vmem:[#allocation9] sm:$0x3]
    %v772 = vld [vmem:[%s21] sm:$0xff]
    %v773 = vld [vmem:[%s21 + $0x8] sm:$0xff]
    %v774 = vld [vmem:[%s21 + $0x10] sm:$0xff]
    %v775 = vld [vmem:[%s21 + $0x18] sm:$0xff]
    %v776 = vld [vmem:[%s21 + $0x20] sm:$0xff]
    %778 = vset.pattern.permute.xlu0 0
    %779 = vperm.xlu0 %778, %v748
    %v780 = vpop.permute.xlu0 %779
    %783 = vset.pattern.permute.xlu0 0
    %784 = vperm.xlu0 %783, %v753
    %v785 = vpop.permute.xlu0 %784
    %788 = vset.pattern.permute.xlu0 0
    %789 = vperm.xlu0 %788, %v758
    %v790 = vpop.permute.xlu0 %789
    %793 = vset.pattern.permute.xlu0 0
    %794 = vperm.xlu0 %793, %v763
    %v795 = vpop.permute.xlu0 %794
    %798 = vset.pattern.permute.xlu0 0
    %799 = vperm.xlu0 %798, %v768
    %v800 = vpop.permute.xlu0 %799
    %v802 = vmul.f32 %v780, %v772
    %v803 = vmul.f32 %v785, %v773
    %v804 = vmul.f32 %v790, %v774
    %v805 = vmul.f32 %v795, %v775
    %v806 = vmul.f32 %v800, %v776
    %v807 = vld [vmem:[#allocation11] sm:$0x1]
    %v809 = vlaneseq
    %v810 = vshrl.u32 %v809, 7
    %v811 = vsub.s32 0, %v810
    %v812 = vrot.slane %v807, %v811
    %vm814 = vcmask 326656
    %v816 = vsel %vm814, %v771, 0
    %818 = vmatprep.subr.mxu0 0.0
    %819 = vmatpush1.msra.mxu0 0.0
    %820 = vmatprep.subr.mxu0 0.0
    %821 = vmatpush1.msra.mxu0 0.0
    %822 = vmatprep.subr.mxu0 0.0
    %823 = vmatpush1.msra.mxu0 0.0
    %824 = vmatprep.subr.mxu0 0.0
    %825 = vmatpush1.msra.mxu0 0.0
    %826 = vmatprep.subr.mxu0 0.0
    %827 = vmatpush1.msra.mxu0 0.0
    %828 = vmatprep.subr.mxu0 0.0
    %829 = vmatpush1.msra.mxu0 0.0
    %830 = vmatprep.subr.mxu0 0.0
    %831 = vmatpush1.msra.mxu0 0.0
    %832 = vmatprep.subr.mxu0 0.0
    %833 = vmatpush1.msra.mxu0 0.0
    %834 = vmatprep.subr.mxu0 0.0
    %835 = vmatpush1.msra.mxu0 0.0
    %836 = vmatprep.subr.mxu0 0.0
    %837 = vmatpush1.msra.mxu0 0.0
    %838 = vmatprep.subr.mxu0 0.0
    %839 = vmatpush1.msra.mxu0 0.0
    %840 = vmatprep.subr.mxu0 0.0
    %841 = vmatpush1.msra.mxu0 %v806
    %842 = vmatprep.subr.mxu0 0.0
    %843 = vmatpush1.msra.mxu0 %v805
    %844 = vmatprep.subr.mxu0 0.0
    %845 = vmatpush1.msra.mxu0 %v804
    %846 = vmatprep.subr.mxu0 0.0
    %847 = vmatpush1.msra.mxu0 %v803
    %848 = vmatprep.subr.mxu0 0.0
    %849 = vmatpush1.msra.mxu0 %v802
    %850 = vmatprep.subr.mxu0 0.0
    %851 = vmatpush2.msra.mxu0 0.0
    %852 = vmatprep.subr.mxu0 0.0
    %853 = vmatpush2.msra.mxu0 0.0
    %854 = vmatprep.subr.mxu0 0.0
    %855 = vmatpush2.msra.mxu0 0.0
    %856 = vmatprep.subr.mxu0 0.0
    %857 = vmatpush2.msra.mxu0 0.0
    %858 = vmatprep.subr.mxu0 0.0
    %859 = vmatpush2.msra.mxu0 0.0
    %860 = vmatprep.subr.mxu0 0.0
    %861 = vmatpush2.msra.mxu0 0.0
    %862 = vmatprep.subr.mxu0 0.0
    %863 = vmatpush2.msra.mxu0 0.0
    %864 = vmatprep.subr.mxu0 0.0
    %865 = vmatpush2.msra.mxu0 0.0
    %866 = vmatprep.subr.mxu0 0.0
    %867 = vmatpush2.msra.mxu0 0.0
    %868 = vmatprep.subr.mxu0 0.0
    %869 = vmatpush2.msra.mxu0 0.0
    %870 = vmatprep.subr.mxu0 0.0
    %871 = vmatpush2.msra.mxu0 0.0
    %872 = vmatprep.subr.mxu0 0.0
    %873 = vmatpush2.msra.mxu0 0.0
    %874 = vmatprep.subr.mxu0 0.0
    %875 = vmatpush2.msra.mxu0 0.0
    %876 = vmatprep.subr.mxu0 0.0
    %877 = vmatpush2.msra.mxu0 0.0
    %878 = vmatprep.subr.mxu0 0.0
    %879 = vmatpush2.msra.mxu0 0.0
    %880 = vmatprep.subr.mxu0 0.0
    %881 = vmatpush2.msra.mxu0 0.0
    %882 = vmatprep.mubr.f32.mxu0 0.0
    %883 = vmatmul.mubr.f32.gmra.mxu0 %v816
    %v884 = vpop.f32.mrf.mxu0
    %v885 = vadd.f32 %v812, %v884
    %v886 = vpop.f32.mrf.mxu0
    %887 = vdwg.mxu0
    %v888 = vld [vmem:[%s25] sm:$0xff]
    %v889 = vld [vmem:[%s25 + $0x8] sm:$0xff]
    %v890 = vmul.f32 %v885, %v885
    %vm891 = vcmask 9216
    %v892 = vsel %vm891, %v890, 0.0
    %893 = vadd.xlane.f32.xlu0 %v892
    %v894 = vpop.xlane.xlu0 %893
    %v895 = vld [vmem:[#allocation14] sm:$0x1]
    %v897 = vlaneseq
    %v898 = vshrl.u32 %v897, 7
    %v899 = vsub.s32 0, %v898
    %v900 = vrot.slane %v895, %v899
    %v902 = vadd.f32 %v894, %v900
    %v903 = vld [vmem:[#allocation12] sm:$0x3]
    %vm904 = vcmask 15360
    %v906 = vsel %vm904, %v885, 0
    %vm908 = vcmask 1041408
    %v910 = vsel %vm908, %v903, 0
    %912 = vmatprep.subr.mxu0 0.0
    %913 = vmatpush1.msra.mxu0 0.0
    %914 = vmatprep.subr.mxu0 0.0
    %915 = vmatpush1.msra.mxu0 0.0
    %916 = vmatprep.subr.mxu0 0.0
    %917 = vmatpush1.msra.mxu0 0.0
    %918 = vmatprep.subr.mxu0 0.0
    %919 = vmatpush1.msra.mxu0 0.0
    %920 = vmatprep.subr.mxu0 0.0
    %921 = vmatpush1.msra.mxu0 0.0
    %922 = vmatprep.subr.mxu0 0.0
    %923 = vmatpush1.msra.mxu0 0.0
    %924 = vmatprep.subr.mxu0 0.0
    %925 = vmatpush1.msra.mxu0 0.0
    %926 = vmatprep.subr.mxu0 0.0
    %927 = vmatpush1.msra.mxu0 0.0
    %928 = vmatprep.subr.mxu0 0.0
    %929 = vmatpush1.msra.mxu0 0.0
    %930 = vmatprep.subr.mxu0 0.0
    %931 = vmatpush1.msra.mxu0 0.0
    %932 = vmatprep.subr.mxu0 0.0
    %933 = vmatpush1.msra.mxu0 0.0
    %934 = vmatprep.subr.mxu0 0.0
    %935 = vmatpush1.msra.mxu0 0.0
    %936 = vmatprep.subr.mxu0 0.0
    %937 = vmatpush1.msra.mxu0 0.0
    %938 = vmatprep.subr.mxu0 0.0
    %939 = vmatpush1.msra.mxu0 0.0
    %940 = vmatprep.subr.mxu0 0.0
    %941 = vmatpush1.msra.mxu0 0.0
    %942 = vmatprep.subr.mxu0 0.0
    %943 = vmatpush1.msra.mxu0 %v910
    %944 = vmatprep.subr.mxu0 0.0
    %945 = vmatpush2.msra.mxu0 0.0
    %946 = vmatprep.subr.mxu0 0.0
    %947 = vmatpush2.msra.mxu0 0.0
    %948 = vmatprep.subr.mxu0 0.0
    %949 = vmatpush2.msra.mxu0 0.0
    %950 = vmatprep.subr.mxu0 0.0
    %951 = vmatpush2.msra.mxu0 0.0
    %952 = vmatprep.subr.mxu0 0.0
    %953 = vmatpush2.msra.mxu0 0.0
    %954 = vmatprep.subr.mxu0 0.0
    %955 = vmatpush2.msra.mxu0 0.0
    %956 = vmatprep.subr.mxu0 0.0
    %957 = vmatpush2.msra.mxu0 0.0
    %958 = vmatprep.subr.mxu0 0.0
    %959 = vmatpush2.msra.mxu0 0.0
    %960 = vmatprep.subr.mxu0 0.0
    %961 = vmatpush2.msra.mxu0 0.0
    %962 = vmatprep.subr.mxu0 0.0
    %963 = vmatpush2.msra.mxu0 0.0
    %964 = vmatprep.subr.mxu0 0.0
    %965 = vmatpush2.msra.mxu0 0.0
    %966 = vmatprep.subr.mxu0 0.0
    %967 = vmatpush2.msra.mxu0 0.0
    %968 = vmatprep.subr.mxu0 0.0
    %969 = vmatpush2.msra.mxu0 0.0
    %970 = vmatprep.subr.mxu0 0.0
    %971 = vmatpush2.msra.mxu0 0.0
    %972 = vmatprep.subr.mxu0 0.0
    %973 = vmatpush2.msra.mxu0 0.0
    %974 = vmatprep.subr.mxu0 0.0
    %975 = vmatpush2.msra.mxu0 0.0
    %976 = vmatprep.mubr.f32.mxu0 0.0
    %977 = vmatmul.mubr.f32.gmra.mxu0 %v906
    %v978 = vpop.f32.mrf.mxu0
    %v979 = vadd.f32 0.0, %v978
    %v980 = vpop.f32.mrf.mxu0
    %981 = vdwg.mxu0
    %v982 = vmul.f32 %v979, 2.0
    %v983 = vsub.f32 %v902, %v982
    %vm984 = vcmask 123904
    %v985 = vsel %vm984, %v983, inf
    %986 = vmin.xlane.f32.xlu0 %v985
    %v987 = vpop.xlane.xlu0 %986
    %v988 = vlaneseq
    %v989 = vand.u32 %v988, 127
    %vm990 = vcmp.le.f32.partialorder %v983, %v987
    %v991 = vsel %vm990, %v989, 16
    %v992 = vsel %vm984, %v991, 2147483647
    %v993 = vand.u32 %v992, 65535
    %v994 = vshra.s32 %v992, 16
    %v995 = vcvt.s32.f32 %v993
    %v996 = vcvt.s32.f32 %v994
    %997 = vmin.xlane.f32.xlu0 %v996
    %v998 = vpop.xlane.xlu0 %997
    %vm999 = vcmp.eq.f32.partialorder %v996, %v998
    %v1000 = vsel %vm999, %v995, inf
    %1001 = vmin.xlane.f32.xlu0 %v1000
    %v1002 = vpop.xlane.xlu0 %1001
    %v1003 = vcvt.f32.s32 %v1002
    %v1004 = vcvt.f32.s32 %v998
    %v1005 = vshll.u32 %v1004, 16
    %v1006 = vadd.s32 %v1005, %v1003
    %vm1007 = vcmp.eq.s32.totalorder %v989, %v1006
    %v1008 = vsel %vm1007, 1, 0
    %v1009 = vcvt.s32.f32 %v1008
    %v1011 = vsel %vm551, %v1009, 0
    %1013 = vmatprep.subr.mxu0 0.0
    %1014 = vmatpush1.msra.mxu0 0.0
    %1015 = vmatprep.subr.mxu0 0.0
    %1016 = vmatpush1.msra.mxu0 0.0
    %1017 = vmatprep.subr.mxu0 0.0
    %1018 = vmatpush1.msra.mxu0 0.0
    %1019 = vmatprep.subr.mxu0 0.0
    %1020 = vmatpush1.msra.mxu0 0.0
    %1021 = vmatprep.subr.mxu0 0.0
    %1022 = vmatpush1.msra.mxu0 0.0
    %1023 = vmatprep.subr.mxu0 0.0
    %1024 = vmatpush1.msra.mxu0 0.0
    %1025 = vmatprep.subr.mxu0 0.0
    %1026 = vmatpush1.msra.mxu0 0.0
    %1027 = vmatprep.subr.mxu0 0.0
    %1028 = vmatpush1.msra.mxu0 0.0
    %1029 = vmatprep.subr.mxu0 0.0
    %1030 = vmatpush1.msra.mxu0 0.0
    %1031 = vmatprep.subr.mxu0 0.0
    %1032 = vmatpush1.msra.mxu0 0.0
    %1033 = vmatprep.subr.mxu0 0.0
    %1034 = vmatpush1.msra.mxu0 0.0
    %1035 = vmatprep.subr.mxu0 0.0
    %1036 = vmatpush1.msra.mxu0 0.0
    %1037 = vmatprep.subr.mxu0 0.0
    %1038 = vmatpush1.msra.mxu0 0.0
    %1039 = vmatprep.subr.mxu0 0.0
    %1040 = vmatpush1.msra.mxu0 0.0
    %1041 = vmatprep.subr.mxu0 0.0
    %1042 = vmatpush1.msra.mxu0 %v889
    %1043 = vmatprep.subr.mxu0 0.0
    %1044 = vmatpush1.msra.mxu0 %v888
    %1045 = vmatprep.subr.mxu0 0.0
    %1046 = vmatpush2.msra.mxu0 0.0
    %1047 = vmatprep.subr.mxu0 0.0
    %1048 = vmatpush2.msra.mxu0 0.0
    %1049 = vmatprep.subr.mxu0 0.0
    %1050 = vmatpush2.msra.mxu0 0.0
    %1051 = vmatprep.subr.mxu0 0.0
    %1052 = vmatpush2.msra.mxu0 0.0
    %1053 = vmatprep.subr.mxu0 0.0
    %1054 = vmatpush2.msra.mxu0 0.0
    %1055 = vmatprep.subr.mxu0 0.0
    %1056 = vmatpush2.msra.mxu0 0.0
    %1057 = vmatprep.subr.mxu0 0.0
    %1058 = vmatpush2.msra.mxu0 0.0
    %1059 = vmatprep.subr.mxu0 0.0
    %1060 = vmatpush2.msra.mxu0 0.0
    %1061 = vmatprep.subr.mxu0 0.0
    %1062 = vmatpush2.msra.mxu0 0.0
    %1063 = vmatprep.subr.mxu0 0.0
    %1064 = vmatpush2.msra.mxu0 0.0
    %1065 = vmatprep.subr.mxu0 0.0
    %1066 = vmatpush2.msra.mxu0 0.0
    %1067 = vmatprep.subr.mxu0 0.0
    %1068 = vmatpush2.msra.mxu0 0.0
    %1069 = vmatprep.subr.mxu0 0.0
    %1070 = vmatpush2.msra.mxu0 0.0
    %1071 = vmatprep.subr.mxu0 0.0
    %1072 = vmatpush2.msra.mxu0 0.0
    %1073 = vmatprep.subr.mxu0 0.0
    %1074 = vmatpush2.msra.mxu0 0.0
    %1075 = vmatprep.subr.mxu0 0.0
    %1076 = vmatpush2.msra.mxu0 0.0
    %1077 = vmatprep.mubr.f32.mxu0 0.0
    %1078 = vmatmul.mubr.f32.gmra.mxu0 %v1011
    %v1079 = vpop.f32.mrf.mxu0
    %v1080 = vadd.f32 0.0, %v1079
    %v1081 = vpop.f32.mrf.mxu0
    %1082 = vdwg.mxu0
    %v1083 = vsub.f32 %v1080, %v885
    %v1084 = vmul.f32 %v1083, %v1083
    %v1085 = vsel %vm891, %v1084, 0.0
    %1086 = vadd.xlane.f32.xlu0 %v1085
    %v1087 = vpop.xlane.xlu0 %1086
    %v1088 = vrot.slane %v1087, 4
    %v1089 = vadd.f32 %v1087, %v1088
    %v1090 = vrot.slane %v1089, 2
    %v1091 = vadd.f32 %v1089, %v1090
    %v1092 = vrot.slane %v1091, 1
    %v1093 = vadd.f32 %v1091, %v1092
    %s1094 = vtos %v1093
    %v1095 = vrcp.pop 4.0
    %s1096 = vtos %v1095
    %s1097 = smul.f32 %s1094, %s1096
    %s1098 = smul.f32 %s1097, 0.01
    %s1099 = sadd.f32 %s1097, %s1098
    %v1100 = vadd.f32 %v885, %v1083
    %v1101 = vsel %vm984, %v1009, 0.0
    %v1102 = vrot.slane %v1101, 4
    %v1103 = vadd.f32 %v1101, %v1102
    %v1104 = vrot.slane %v1103, 2
    %v1105 = vadd.f32 %v1103, %v1104
    %v1106 = vrot.slane %v1105, 1
    %v1107 = vadd.f32 %v1105, %v1106
    %v1108 = vrcp.pop 2.0
    %v1109 = vmul.f32 %v1107, %v1108
    %v1110 = vadd.f32 %v1109, 1e-10
    %v1111 = vlog2.pop %v1110
    %v1112 = vmul.f32 %v1111, 0.6931472
    %v1113 = vmul.f32 %v1109, %v1112
    %vm1114 = vcmask 122880
    %v1115 = vsel %vm1114, %v1113, 0.0
    %1116 = vadd.xlane.f32.xlu0 %v1115
    %v1117 = vpop.xlane.xlu0 %1116
    %v1118 = vrot.slane %v1117, 4
    %v1119 = vadd.f32 %v1117, %v1118
    %v1120 = vrot.slane %v1119, 2
    %v1121 = vadd.f32 %v1119, %v1120
    %v1122 = vrot.slane %v1121, 1
    %v1123 = vadd.f32 %v1121, %v1122
    %s1124 = vtos %v1123
    %s1125 = ssub.f32 0.0, %s1124
    %v1126 = vstv %s1125
    %v1127 = vmul.f32 %v1126, 1.442695
    %v1128 = vpow.pop %v1127
    %s1129 = vtos %v1128
    %v1130 = vld [vmem:[%s31] sm:$0xff]
    %v1131 = vld [vmem:[%s31 + $0x8] sm:$0xff]
    %v1132 = vld [vmem:[%s31 + $0x10] sm:$0xff]
    %v1133 = vld [vmem:[%s31 + $0x18] sm:$0xff]
    %v1134 = vld [vmem:[%s31 + $0x20] sm:$0xff]
    %v1136 = vsel %vm904, %v1130, 0
    %v1139 = vsel %vm904, %v1131, 0
    %v1142 = vsel %vm904, %v1132, 0
    %v1145 = vsel %vm904, %v1133, 0
    %v1148 = vsel %vm904, %v1134, 0
    %v1151 = vsel %vm908, %v1100, 0
    %1153 = vmatprep.subr.mxu0 0.0
    %1154 = vmatpush1.msra.mxu0 0.0
    %1155 = vmatprep.subr.mxu0 0.0
    %1156 = vmatpush1.msra.mxu0 0.0
    %1157 = vmatprep.subr.mxu0 0.0
    %1158 = vmatpush1.msra.mxu0 0.0
    %1159 = vmatprep.subr.mxu0 0.0
    %1160 = vmatpush1.msra.mxu0 0.0
    %1161 = vmatprep.subr.mxu0 0.0
    %1162 = vmatpush1.msra.mxu0 0.0
    %1163 = vmatprep.subr.mxu0 0.0
    %1164 = vmatpush1.msra.mxu0 0.0
    %1165 = vmatprep.subr.mxu0 0.0
    %1166 = vmatpush1.msra.mxu0 0.0
    %1167 = vmatprep.subr.mxu0 0.0
    %1168 = vmatpush1.msra.mxu0 0.0
    %1169 = vmatprep.subr.mxu0 0.0
    %1170 = vmatpush1.msra.mxu0 0.0
    %1171 = vmatprep.subr.mxu0 0.0
    %1172 = vmatpush1.msra.mxu0 0.0
    %1173 = vmatprep.subr.mxu0 0.0
    %1174 = vmatpush1.msra.mxu0 0.0
    %1175 = vmatprep.subr.mxu0 0.0
    %1176 = vmatpush1.msra.mxu0 0.0
    %1177 = vmatprep.subr.mxu0 0.0
    %1178 = vmatpush1.msra.mxu0 0.0
    %1179 = vmatprep.subr.mxu0 0.0
    %1180 = vmatpush1.msra.mxu0 0.0
    %1181 = vmatprep.subr.mxu0 0.0
    %1182 = vmatpush1.msra.mxu0 0.0
    %1183 = vmatprep.subr.mxu0 0.0
    %1184 = vmatpush1.msra.mxu0 %v1151
    %1185 = vmatprep.subr.mxu0 0.0
    %1186 = vmatpush2.msra.mxu0 0.0
    %1187 = vmatprep.subr.mxu0 0.0
    %1188 = vmatpush2.msra.mxu0 0.0
    %1189 = vmatprep.subr.mxu0 0.0
    %1190 = vmatpush2.msra.mxu0 0.0
    %1191 = vmatprep.subr.mxu0 0.0
    %1192 = vmatpush2.msra.mxu0 0.0
    %1193 = vmatprep.subr.mxu0 0.0
    %1194 = vmatpush2.msra.mxu0 0.0
    %1195 = vmatprep.subr.mxu0 0.0
    %1196 = vmatpush2.msra.mxu0 0.0
    %1197 = vmatprep.subr.mxu0 0.0
    %1198 = vmatpush2.msra.mxu0 0.0
    %1199 = vmatprep.subr.mxu0 0.0
    %1200 = vmatpush2.msra.mxu0 0.0
    %1201 = vmatprep.subr.mxu0 0.0
    %1202 = vmatpush2.msra.mxu0 0.0
    %1203 = vmatprep.subr.mxu0 0.0
    %1204 = vmatpush2.msra.mxu0 0.0
    %1205 = vmatprep.subr.mxu0 0.0
    %1206 = vmatpush2.msra.mxu0 0.0
    %1207 = vmatprep.subr.mxu0 0.0
    %1208 = vmatpush2.msra.mxu0 0.0
    %1209 = vmatprep.subr.mxu0 0.0
    %1210 = vmatpush2.msra.mxu0 0.0
    %1211 = vmatprep.subr.mxu0 0.0
    %1212 = vmatpush2.msra.mxu0 0.0
    %1213 = vmatprep.subr.mxu0 0.0
    %1214 = vmatpush2.msra.mxu0 0.0
    %1215 = vmatprep.subr.mxu0 0.0
    %1216 = vmatpush2.msra.mxu0 0.0
    %1217 = vmatprep.mubr.f32.mxu0 0.0
    %1218 = vmatmul.mubr.f32.gmra.mxu0 %v1136
    %v1219 = vpop.f32.mrf.mxu0
    %v1220 = vadd.f32 0.0, %v1219
    %v1221 = vpop.f32.mrf.mxu0
    %1222 = vmatprep.mubr.f32.mxu0 0.0
    %1223 = vmatmul.mubr.f32.gmra.mxu0 %v1139
    %v1224 = vpop.f32.mrf.mxu0
    %v1225 = vadd.f32 0.0, %v1224
    %v1226 = vpop.f32.mrf.mxu0
    %1227 = vmatprep.mubr.f32.mxu0 0.0
    %1228 = vmatmul.mubr.f32.gmra.mxu0 %v1142
    %v1229 = vpop.f32.mrf.mxu0
    %v1230 = vadd.f32 0.0, %v1229
    %v1231 = vpop.f32.mrf.mxu0
    %1232 = vmatprep.mubr.f32.mxu0 0.0
    %1233 = vmatmul.mubr.f32.gmra.mxu0 %v1145
    %v1234 = vpop.f32.mrf.mxu0
    %v1235 = vadd.f32 0.0, %v1234
    %v1236 = vpop.f32.mrf.mxu0
    %1237 = vmatprep.mubr.f32.mxu0 0.0
    %1238 = vmatmul.mubr.f32.gmra.mxu0 %v1148
    %v1239 = vpop.f32.mrf.mxu0
    %v1240 = vadd.f32 0.0, %v1239
    %v1241 = vpop.f32.mrf.mxu0
    %1242 = vdwg.mxu0
    %v1243 = vld [vmem:[%s33] sm:$0xff]
    %v1244 = vld [vmem:[%s33 + $0x8] sm:$0xff]
    %v1245 = vld [vmem:[%s33 + $0x10] sm:$0xff]
    %v1246 = vld [vmem:[%s33 + $0x18] sm:$0xff]
    %v1247 = vld [vmem:[%s33 + $0x20] sm:$0xff]
    %v1248 = vmul.f32 %v1220, %v1243
    %v1249 = vmul.f32 %v1225, %v1244
    %v1250 = vmul.f32 %v1230, %v1245
    %v1251 = vmul.f32 %v1235, %v1246
    %v1252 = vmul.f32 %v1240, %v1247
    %v1253 = vsel %vm904, %v1248, 0.0
    %1254 = vadd.xlane.f32.xlu0 %v1253
    %v1255 = vpop.xlane.xlu0 %1254
    %v1256 = vsel %vm904, %v1249, 0.0
    %1257 = vadd.xlane.f32.xlu0 %v1256
    %v1258 = vpop.xlane.xlu0 %1257
    %v1259 = vsel %vm904, %v1250, 0.0
    %1260 = vadd.xlane.f32.xlu0 %v1259
    %v1261 = vpop.xlane.xlu0 %1260
    %v1262 = vsel %vm904, %v1251, 0.0
    %1263 = vadd.xlane.f32.xlu0 %v1262
    %v1264 = vpop.xlane.xlu0 %1263
    %v1265 = vsel %vm904, %v1252, 0.0
    %1266 = vadd.xlane.f32.xlu0 %v1265
    %v1267 = vpop.xlane.xlu0 %1266
    %v1268 = vld [vmem:[%s35] sm:$0xff]
    %v1269 = vld [vmem:[%s35 + $0x8] sm:$0xff]
    %v1270 = vld [vmem:[%s35 + $0x10] sm:$0xff]
    %v1271 = vld [vmem:[%s35 + $0x18] sm:$0xff]
    %v1272 = vld [vmem:[%s35 + $0x20] sm:$0xff]
    %v1273 = vadd.f32 %v1255, %v1268
    %v1274 = vadd.f32 %v1258, %v1269
    %v1275 = vadd.f32 %v1261, %v1270
    %v1276 = vadd.f32 %v1264, %v1271
    %v1277 = vadd.f32 %v1267, %v1272
    %v1278 = vld [vmem:[#allocation15] sm:$0x1]
    %v1279 = vld [vmem:[#allocation17] sm:$0x1]
    %1281 = vset.pattern.permute.xlu0 0
    %1282 = vperm.xlu0 %1281, %v1273
    %v1283 = vpop.permute.xlu0 %1282
    %1286 = vset.pattern.permute.xlu0 0
    %1287 = vperm.xlu0 %1286, %v1274
    %v1288 = vpop.permute.xlu0 %1287
    %1291 = vset.pattern.permute.xlu0 0
    %1292 = vperm.xlu0 %1291, %v1275
    %v1293 = vpop.permute.xlu0 %1292
    %1296 = vset.pattern.permute.xlu0 0
    %1297 = vperm.xlu0 %1296, %v1276
    %v1298 = vpop.permute.xlu0 %1297
    %1301 = vset.pattern.permute.xlu0 0
    %1302 = vperm.xlu0 %1301, %v1277
    %v1303 = vpop.permute.xlu0 %1302
    %v1306 = vlaneseq
    %v1307 = vshrl.u32 %v1306, 7
    %v1308 = vsub.s32 0, %v1307
    %v1309 = vrot.slane %v1278, %v1308
    %v1311 = vmul.f32 %v1283, %v1309
    %v1312 = vmul.f32 %v1288, %v1309
    %v1313 = vmul.f32 %v1293, %v1309
    %v1314 = vmul.f32 %v1298, %v1309
    %v1315 = vmul.f32 %v1303, %v1309
    %v1317 = vlaneseq
    %v1318 = vshrl.u32 %v1317, 7
    %v1319 = vsub.s32 0, %v1318
    %v1320 = vrot.slane %v1279, %v1319
    %v1322 = vadd.f32 %v1311, %v1320
    %v1323 = vadd.f32 %v1312, %v1320
    %v1324 = vadd.f32 %v1313, %v1320
    %v1325 = vadd.f32 %v1314, %v1320
    %v1326 = vadd.f32 %v1315, %v1320
    %v1327 = vld [vmem:[#allocation18] sm:$0xff]
    %v1328 = vld [vmem:[#allocation20] sm:$0x1]
    %v1330 = vlaneseq
    %v1331 = vshrl.u32 %v1330, 7
    %v1332 = vsub.s32 0, %v1331
    %v1333 = vrot.slane %v1328, %v1332
    %v1336 = vsel %vm665, %v1322, 0
    %v1339 = vsel %vm665, %v1323, 0
    %v1342 = vsel %vm665, %v1324, 0
    %v1345 = vsel %vm665, %v1325, 0
    %v1348 = vsel %vm665, %v1326, 0
    %1350 = vmatprep.subr.mxu0 0.0
    %1351 = vmatpush1.msra.mxu0 0.0
    %1352 = vmatprep.subr.mxu0 0.0
    %1353 = vmatpush1.msra.mxu0 0.0
    %1354 = vmatprep.subr.mxu0 0.0
    %1355 = vmatpush1.msra.mxu0 0.0
    %1356 = vmatprep.subr.mxu0 0.0
    %1357 = vmatpush1.msra.mxu0 0.0
    %1358 = vmatprep.subr.mxu0 0.0
    %1359 = vmatpush1.msra.mxu0 0.0
    %1360 = vmatprep.subr.mxu0 0.0
    %1361 = vmatpush1.msra.mxu0 0.0
    %1362 = vmatprep.subr.mxu0 0.0
    %1363 = vmatpush1.msra.mxu0 0.0
    %1364 = vmatprep.subr.mxu0 0.0
    %1365 = vmatpush1.msra.mxu0 0.0
    %1366 = vmatprep.subr.mxu0 0.0
    %1367 = vmatpush1.msra.mxu0 0.0
    %1368 = vmatprep.subr.mxu0 0.0
    %1369 = vmatpush1.msra.mxu0 0.0
    %1370 = vmatprep.subr.mxu0 0.0
    %1371 = vmatpush1.msra.mxu0 0.0
    %1372 = vmatprep.subr.mxu0 0.0
    %1373 = vmatpush1.msra.mxu0 0.0
    %1374 = vmatprep.subr.mxu0 0.0
    %1375 = vmatpush1.msra.mxu0 0.0
    %1376 = vmatprep.subr.mxu0 0.0
    %1377 = vmatpush1.msra.mxu0 0.0
    %1378 = vmatprep.subr.mxu0 0.0
    %1379 = vmatpush1.msra.mxu0 0.0
    %1380 = vmatprep.subr.mxu0 0.0
    %1381 = vmatpush1.msra.mxu0 %v1327
    %1382 = vmatprep.subr.mxu0 0.0
    %1383 = vmatpush2.msra.mxu0 0.0
    %1384 = vmatprep.subr.mxu0 0.0
    %1385 = vmatpush2.msra.mxu0 0.0
    %1386 = vmatprep.subr.mxu0 0.0
    %1387 = vmatpush2.msra.mxu0 0.0
    %1388 = vmatprep.subr.mxu0 0.0
    %1389 = vmatpush2.msra.mxu0 0.0
    %1390 = vmatprep.subr.mxu0 0.0
    %1391 = vmatpush2.msra.mxu0 0.0
    %1392 = vmatprep.subr.mxu0 0.0
    %1393 = vmatpush2.msra.mxu0 0.0
    %1394 = vmatprep.subr.mxu0 0.0
    %1395 = vmatpush2.msra.mxu0 0.0
    %1396 = vmatprep.subr.mxu0 0.0
    %1397 = vmatpush2.msra.mxu0 0.0
    %1398 = vmatprep.subr.mxu0 0.0
    %1399 = vmatpush2.msra.mxu0 0.0
    %1400 = vmatprep.subr.mxu0 0.0
    %1401 = vmatpush2.msra.mxu0 0.0
    %1402 = vmatprep.subr.mxu0 0.0
    %1403 = vmatpush2.msra.mxu0 0.0
    %1404 = vmatprep.subr.mxu0 0.0
    %1405 = vmatpush2.msra.mxu0 0.0
    %1406 = vmatprep.subr.mxu0 0.0
    %1407 = vmatpush2.msra.mxu0 0.0
    %1408 = vmatprep.subr.mxu0 0.0
    %1409 = vmatpush2.msra.mxu0 0.0
    %1410 = vmatprep.subr.mxu0 0.0
    %1411 = vmatpush2.msra.mxu0 0.0
    %1412 = vmatprep.subr.mxu0 0.0
    %1413 = vmatpush2.msra.mxu0 0.0
    %1414 = vmatprep.mubr.f32.mxu0 0.0
    %1415 = vmatmul.mubr.f32.gmra.mxu0 %v1336
    %v1416 = vpop.f32.mrf.mxu0
    %v1417 = vadd.f32 %v1333, %v1416
    %v1418 = vpop.f32.mrf.mxu0
    %1419 = vmatprep.mubr.f32.mxu0 0.0
    %1420 = vmatmul.mubr.f32.gmra.mxu0 %v1339
    %v1421 = vpop.f32.mrf.mxu0
    %v1422 = vadd.f32 %v1333, %v1421
    %v1423 = vpop.f32.mrf.mxu0
    %1424 = vmatprep.mubr.f32.mxu0 0.0
    %1425 = vmatmul.mubr.f32.gmra.mxu0 %v1342
    %v1426 = vpop.f32.mrf.mxu0
    %v1427 = vadd.f32 %v1333, %v1426
    %v1428 = vpop.f32.mrf.mxu0
    %1429 = vmatprep.mubr.f32.mxu0 0.0
    %1430 = vmatmul.mubr.f32.gmra.mxu0 %v1345
    %v1431 = vpop.f32.mrf.mxu0
    %v1432 = vadd.f32 %v1333, %v1431
    %v1433 = vpop.f32.mrf.mxu0
    %1434 = vmatprep.mubr.f32.mxu0 0.0
    %1435 = vmatmul.mubr.f32.gmra.mxu0 %v1348
    %v1436 = vpop.f32.mrf.mxu0
    %v1437 = vadd.f32 %v1333, %v1436
    %v1438 = vpop.f32.mrf.mxu0
    %1439 = vdwg.mxu0
    %v1440 = vld [vmem:[#allocation21] sm:$0xff]
    %v1441 = vld [vmem:[#allocation21 + $0x8] sm:$0xff]
    %v1442 = vld [vmem:[#allocation23] sm:$0x1]
    %v1444 = vlaneseq
    %v1445 = vshrl.u32 %v1444, 7
    %v1446 = vsub.s32 0, %v1445
    %v1447 = vrot.slane %v1442, %v1446
    %v1450 = vsel %vm551, %v1417, 0
    %v1453 = vsel %vm551, %v1422, 0
    %v1456 = vsel %vm551, %v1427, 0
    %v1459 = vsel %vm551, %v1432, 0
    %v1462 = vsel %vm551, %v1437, 0
    %1464 = vmatprep.subr.mxu0 0.0
    %1465 = vmatpush1.msra.mxu0 0.0
    %1466 = vmatprep.subr.mxu0 0.0
    %1467 = vmatpush1.msra.mxu0 0.0
    %1468 = vmatprep.subr.mxu0 0.0
    %1469 = vmatpush1.msra.mxu0 0.0
    %1470 = vmatprep.subr.mxu0 0.0
    %1471 = vmatpush1.msra.mxu0 0.0
    %1472 = vmatprep.subr.mxu0 0.0
    %1473 = vmatpush1.msra.mxu0 0.0
    %1474 = vmatprep.subr.mxu0 0.0
    %1475 = vmatpush1.msra.mxu0 0.0
    %1476 = vmatprep.subr.mxu0 0.0
    %1477 = vmatpush1.msra.mxu0 0.0
    %1478 = vmatprep.subr.mxu0 0.0
    %1479 = vmatpush1.msra.mxu0 0.0
    %1480 = vmatprep.subr.mxu0 0.0
    %1481 = vmatpush1.msra.mxu0 0.0
    %1482 = vmatprep.subr.mxu0 0.0
    %1483 = vmatpush1.msra.mxu0 0.0
    %1484 = vmatprep.subr.mxu0 0.0
    %1485 = vmatpush1.msra.mxu0 0.0
    %1486 = vmatprep.subr.mxu0 0.0
    %1487 = vmatpush1.msra.mxu0 0.0
    %1488 = vmatprep.subr.mxu0 0.0
    %1489 = vmatpush1.msra.mxu0 0.0
    %1490 = vmatprep.subr.mxu0 0.0
    %1491 = vmatpush1.msra.mxu0 0.0
    %1492 = vmatprep.subr.mxu0 0.0
    %1493 = vmatpush1.msra.mxu0 %v1441
    %1494 = vmatprep.subr.mxu0 0.0
    %1495 = vmatpush1.msra.mxu0 %v1440
    %1496 = vmatprep.subr.mxu0 0.0
    %1497 = vmatpush2.msra.mxu0 0.0
    %1498 = vmatprep.subr.mxu0 0.0
    %1499 = vmatpush2.msra.mxu0 0.0
    %1500 = vmatprep.subr.mxu0 0.0
    %1501 = vmatpush2.msra.mxu0 0.0
    %1502 = vmatprep.subr.mxu0 0.0
    %1503 = vmatpush2.msra.mxu0 0.0
    %1504 = vmatprep.subr.mxu0 0.0
    %1505 = vmatpush2.msra.mxu0 0.0
    %1506 = vmatprep.subr.mxu0 0.0
    %1507 = vmatpush2.msra.mxu0 0.0
    %1508 = vmatprep.subr.mxu0 0.0
    %1509 = vmatpush2.msra.mxu0 0.0
    %1510 = vmatprep.subr.mxu0 0.0
    %1511 = vmatpush2.msra.mxu0 0.0
    %1512 = vmatprep.subr.mxu0 0.0
    %1513 = vmatpush2.msra.mxu0 0.0
    %1514 = vmatprep.subr.mxu0 0.0
    %1515 = vmatpush2.msra.mxu0 0.0
    %1516 = vmatprep.subr.mxu0 0.0
    %1517 = vmatpush2.msra.mxu0 0.0
    %1518 = vmatprep.subr.mxu0 0.0
    %1519 = vmatpush2.msra.mxu0 0.0
    %1520 = vmatprep.subr.mxu0 0.0
    %1521 = vmatpush2.msra.mxu0 0.0
    %1522 = vmatprep.subr.mxu0 0.0
    %1523 = vmatpush2.msra.mxu0 0.0
    %1524 = vmatprep.subr.mxu0 0.0
    %1525 = vmatpush2.msra.mxu0 0.0
    %1526 = vmatprep.subr.mxu0 0.0
    %1527 = vmatpush2.msra.mxu0 0.0
    %1528 = vmatprep.mubr.f32.mxu0 0.0
    %1529 = vmatmul.mubr.f32.gmra.mxu0 %v1450
    %v1530 = vpop.f32.mrf.mxu0
    %v1531 = vadd.f32 %v1447, %v1530
    %v1532 = vpop.f32.mrf.mxu0
    %1533 = vmatprep.mubr.f32.mxu0 0.0
    %1534 = vmatmul.mubr.f32.gmra.mxu0 %v1453
    %v1535 = vpop.f32.mrf.mxu0
    %v1536 = vadd.f32 %v1447, %v1535
    %v1537 = vpop.f32.mrf.mxu0
    %1538 = vmatprep.mubr.f32.mxu0 0.0
    %1539 = vmatmul.mubr.f32.gmra.mxu0 %v1456
    %v1540 = vpop.f32.mrf.mxu0
    %v1541 = vadd.f32 %v1447, %v1540
    %v1542 = vpop.f32.mrf.mxu0
    %1543 = vmatprep.mubr.f32.mxu0 0.0
    %1544 = vmatmul.mubr.f32.gmra.mxu0 %v1459
    %v1545 = vpop.f32.mrf.mxu0
    %v1546 = vadd.f32 %v1447, %v1545
    %v1547 = vpop.f32.mrf.mxu0
    %1548 = vmatprep.mubr.f32.mxu0 0.0
    %1549 = vmatmul.mubr.f32.gmra.mxu0 %v1462
    %v1550 = vpop.f32.mrf.mxu0
    %v1551 = vadd.f32 %v1447, %v1550
    %v1552 = vpop.f32.mrf.mxu0
    %1553 = vdwg.mxu0
    %v1554 = vld [vmem:[#allocation24] sm:$0xff]
    %v1555 = vld [vmem:[#allocation24 + $0x8] sm:$0xff]
    %v1556 = vld [vmem:[#allocation24 + $0x10] sm:$0xff]
    %v1557 = vld [vmem:[#allocation26] sm:$0x1]
    %v1559 = vlaneseq
    %v1560 = vshrl.u32 %v1559, 7
    %v1561 = vsub.s32 0, %v1560
    %v1562 = vrot.slane %v1557, %v1561
    %v1565 = vsel %vm436, %v1531, 0
    %v1568 = vsel %vm436, %v1536, 0
    %v1571 = vsel %vm436, %v1541, 0
    %v1574 = vsel %vm436, %v1546, 0
    %v1577 = vsel %vm436, %v1551, 0
    %1579 = vmatprep.subr.mxu0 0.0
    %1580 = vmatpush1.msra.mxu0 0.0
    %1581 = vmatprep.subr.mxu0 0.0
    %1582 = vmatpush1.msra.mxu0 0.0
    %1583 = vmatprep.subr.mxu0 0.0
    %1584 = vmatpush1.msra.mxu0 0.0
    %1585 = vmatprep.subr.mxu0 0.0
    %1586 = vmatpush1.msra.mxu0 0.0
    %1587 = vmatprep.subr.mxu0 0.0
    %1588 = vmatpush1.msra.mxu0 0.0
    %1589 = vmatprep.subr.mxu0 0.0
    %1590 = vmatpush1.msra.mxu0 0.0
    %1591 = vmatprep.subr.mxu0 0.0
    %1592 = vmatpush1.msra.mxu0 0.0
    %1593 = vmatprep.subr.mxu0 0.0
    %1594 = vmatpush1.msra.mxu0 0.0
    %1595 = vmatprep.subr.mxu0 0.0
    %1596 = vmatpush1.msra.mxu0 0.0
    %1597 = vmatprep.subr.mxu0 0.0
    %1598 = vmatpush1.msra.mxu0 0.0
    %1599 = vmatprep.subr.mxu0 0.0
    %1600 = vmatpush1.msra.mxu0 0.0
    %1601 = vmatprep.subr.mxu0 0.0
    %1602 = vmatpush1.msra.mxu0 0.0
    %1603 = vmatprep.subr.mxu0 0.0
    %1604 = vmatpush1.msra.mxu0 0.0
    %1605 = vmatprep.subr.mxu0 0.0
    %1606 = vmatpush1.msra.mxu0 %v1556
    %1607 = vmatprep.subr.mxu0 0.0
    %1608 = vmatpush1.msra.mxu0 %v1555
    %1609 = vmatprep.subr.mxu0 0.0
    %1610 = vmatpush1.msra.mxu0 %v1554
    %1611 = vmatprep.subr.mxu0 0.0
    %1612 = vmatpush2.msra.mxu0 0.0
    %1613 = vmatprep.subr.mxu0 0.0
    %1614 = vmatpush2.msra.mxu0 0.0
    %1615 = vmatprep.subr.mxu0 0.0
    %1616 = vmatpush2.msra.mxu0 0.0
    %1617 = vmatprep.subr.mxu0 0.0
    %1618 = vmatpush2.msra.mxu0 0.0
    %1619 = vmatprep.subr.mxu0 0.0
    %1620 = vmatpush2.msra.mxu0 0.0
    %1621 = vmatprep.subr.mxu0 0.0
    %1622 = vmatpush2.msra.mxu0 0.0
    %1623 = vmatprep.subr.mxu0 0.0
    %1624 = vmatpush2.msra.mxu0 0.0
    %1625 = vmatprep.subr.mxu0 0.0
    %1626 = vmatpush2.msra.mxu0 0.0
    %1627 = vmatprep.subr.mxu0 0.0
    %1628 = vmatpush2.msra.mxu0 0.0
    %1629 = vmatprep.subr.mxu0 0.0
    %1630 = vmatpush2.msra.mxu0 0.0
    %1631 = vmatprep.subr.mxu0 0.0
    %1632 = vmatpush2.msra.mxu0 0.0
    %1633 = vmatprep.subr.mxu0 0.0
    %1634 = vmatpush2.msra.mxu0 0.0
    %1635 = vmatprep.subr.mxu0 0.0
    %1636 = vmatpush2.msra.mxu0 0.0
    %1637 = vmatprep.subr.mxu0 0.0
    %1638 = vmatpush2.msra.mxu0 0.0
    %1639 = vmatprep.subr.mxu0 0.0
    %1640 = vmatpush2.msra.mxu0 0.0
    %1641 = vmatprep.subr.mxu0 0.0
    %1642 = vmatpush2.msra.mxu0 0.0
    %1643 = vmatprep.mubr.f32.mxu0 0.0
    %1644 = vmatmul.mubr.f32.gmra.mxu0 %v1565
    %v1645 = vpop.f32.mrf.mxu0
    %v1646 = vadd.f32 %v1562, %v1645
    %v1647 = vpop.f32.mrf.mxu0
    %1648 = vmatprep.mubr.f32.mxu0 0.0
    %1649 = vmatmul.mubr.f32.gmra.mxu0 %v1568
    %v1650 = vpop.f32.mrf.mxu0
    %v1651 = vadd.f32 %v1562, %v1650
    %v1652 = vpop.f32.mrf.mxu0
    %1653 = vmatprep.mubr.f32.mxu0 0.0
    %1654 = vmatmul.mubr.f32.gmra.mxu0 %v1571
    %v1655 = vpop.f32.mrf.mxu0
    %v1656 = vadd.f32 %v1562, %v1655
    %v1657 = vpop.f32.mrf.mxu0
    %1658 = vmatprep.mubr.f32.mxu0 0.0
    %1659 = vmatmul.mubr.f32.gmra.mxu0 %v1574
    %v1660 = vpop.f32.mrf.mxu0
    %v1661 = vadd.f32 %v1562, %v1660
    %v1662 = vpop.f32.mrf.mxu0
    %1663 = vmatprep.mubr.f32.mxu0 0.0
    %1664 = vmatmul.mubr.f32.gmra.mxu0 %v1577
    %v1665 = vpop.f32.mrf.mxu0
    %v1666 = vadd.f32 %v1562, %v1665
    %v1667 = vpop.f32.mrf.mxu0
    %1668 = vdwg.mxu0
    %1669 = vst.msk [vmem:[%s53] sm:$0xff] %vm320, %v1646
    %1670 = vst.msk [vmem:[%s53 + $0x8] sm:$0xff] %vm320, %v1651
    %1671 = vst.msk [vmem:[%s53 + $0x10] sm:$0xff] %vm320, %v1656
    %1672 = vst.msk [vmem:[%s53 + $0x18] sm:$0xff] %vm320, %v1661
    %1673 = vst.msk [vmem:[%s53 + $0x20] sm:$0xff] %vm320, %v1666
    %1674 = vst.msk [vmem:[#allocation27] sm:$0x3] %vm891, %v885
    %1675 = vst.msk [vmem:[#allocation28] sm:$0x3] %vm891, %v1100
    %vm1676 = vcmask 1024
    %1677 = vst.msk [vmem:[%s59] sm:$0x3] %vm1676, %v1006
    %vm1678 = vcmp.eq.s32.totalorder %v989, 0
    %v1679 = vstv %s1099
    %v1680 = vstv %s1129
    %v1681 = vsel %vm1678, %v1679, %v1680
    %vm1682 = vcmask 8192
    %1683 = vst.msk [vmem:[%s61] sm:$0x1] %vm1682, %v1681
    // Predicated region
    $region166: #{forward.1} parent=1 // pred_check
      _
    $region167: #{forward.1} parent=1 // pred_check_branch
      %1685 = sbr.rel (0) target = $region169
    $region168: #{forward.1} parent=1 // pred_region
      _
    $region169: #{forward.1} parent=1 // pred_fallthru
      _
    // Predicated region
    $region170: #{forward.1} parent=1 // pred_check
      _
    $region171: #{forward.1} parent=1 // pred_check_branch
      %1687 = sbr.rel (0) target = $region173
    $region172: #{forward.1} parent=1 // pred_region
      %s1689 = ssub.s32 32, 32
      %1690 = vsyncadd [#allocation5], %s1689
      %s1692 = sshll.u32 [#allocation27], 4
      %s1693 = int_to_ptr.vmem [resolvable:$true] %s1692
      %1695 = dma.vmem_to_hbm [thread:$0]  %s1693, 32, %s55, [#allocation5]
    $region173: #{forward.1} parent=1 // pred_fallthru
      _
    // Predicated region
    $region174: #{forward.1} parent=1 // pred_check
      _
    $region175: #{forward.1} parent=1 // pred_check_branch
      %1697 = sbr.rel (0) target = $region177
    $region176: #{forward.1} parent=1 // pred_region
      %s1699 = ssub.s32 32, 32
      %1700 = vsyncadd [#allocation29], %s1699
      %s1702 = sshll.u32 [#allocation28], 4
      %s1703 = int_to_ptr.vmem [resolvable:$true] %s1702
      %1705 = dma.vmem_to_hbm [thread:$0]  %s1703, 32, %s57, [#allocation29]
    $region177: #{forward.1} parent=1 // pred_fallthru
      _
    // Predicated region
    $region178: #{forward.1} parent=1 // pred_check
      _
    $region179: #{forward.1} parent=1 // pred_check_branch
      %1707 = sbr.rel (0) target = $region181
    $region180: #{forward.1} parent=1 // pred_region
      _
    $region181: #{forward.1} parent=1 // pred_fallthru
      _
    // Predicated region
    $region182: #{forward.1} parent=1 // pred_check
      _
    $region183: #{forward.1} parent=1 // pred_check_branch
      %1709 = sbr.rel (0) target = $region185
    $region184: #{forward.1} parent=1 // pred_region
      _
    $region185: #{forward.1} parent=1 // pred_fallthru
      _
    // Predicated region
    $region186: #{forward.1} parent=1 // pred_check
      _
    $region187: #{forward.1} parent=1 // pred_check_branch
      %1711 = sbr.rel (0) target = $region189
    $region188: #{forward.1} parent=1 // pred_region
      _
    $region189: #{forward.1} parent=1 // pred_fallthru
      _
    // Predicated region
    $region190: #{forward.1} parent=1 // pred_check
      _
    $region191: #{forward.1} parent=1 // pred_check_branch
      %1713 = sbr.rel (0) target = $region193
    $region192: #{forward.1} parent=1 // pred_region
      %1714 = dma.done [#allocation5], 32
    $region193: #{forward.1} parent=1 // pred_fallthru
      _
    // Predicated region
    $region194: #{forward.1} parent=1 // pred_check
      _
    $region195: #{forward.1} parent=1 // pred_check_branch
      %1716 = sbr.rel (0) target = $region197
    $region196: #{forward.1} parent=1 // pred_region
      %1717 = dma.done [#allocation29], 32
    $region197: #{forward.1} parent=1 // pred_fallthru
      _
    // Predicated region
    $region198: #{forward.1} parent=1 // pred_check
      _
    $region199: #{forward.1} parent=1 // pred_check_branch
      %1719 = sbr.rel (0) target = $region201
    $region200: #{forward.1} parent=1 // pred_region
      _
    $region201: #{forward.1} parent=1 // pred_fallthru
      _
    // Predicated region
    $region202: #{forward.1} parent=1 // pred_check
      _
    $region203: #{forward.1} parent=1 // pred_check_branch
      %1721 = sbr.rel (0) target = $region205
    $region204: #{forward.1} parent=1 // pred_region
      _
    $region205: #{forward.1} parent=1 // pred_fallthru
      _
    %1722 = vsyncpa [#allocation4], 1
    %1723 = vsyncpa [#allocation7], 1
    %1724 = vsyncpa [#allocation10], 1
    %1725 = vsyncpa [#allocation13], 1
    %1726 = vsyncpa [#allocation16], 1
    %1727 = vsyncpa [#allocation19], 1
    %1728 = vsyncpa [#allocation22], 1
    %1729 = vsyncpa [#allocation25], 1
    %1730 = vsyncpa [#allocation5], 1
    %1731 = vsyncpa [#allocation29], 1

</llo_original>
